<compile_context>
chip_gen: v7x
topology: tpu7x:2x2x1
jax: 0.10.0
libtpu: 0.0.40
codegen_flags: <defaults>
</compile_context>

<pallas_src>
import jax
import jax.numpy as jnp
from jax.experimental import pallas as pl
from jax.experimental.pallas import tpu as pltpu

KH = KW = 3
C_IN = 3
C_OUT = 6


def conv2d_valid_kernel(x_ref, w_ref, b_ref, o_ref):
    # x_ref: (1, Cin, H, W)   VMEM   (one image per grid step, W on lanes)
    # w_ref: (Cout*Cin*KH*KW,) SMEM  (flattened OIHW, scalar reads)
    # b_ref: (Cout,)           SMEM
    # o_ref: (1, Cout, Ho, Wo) VMEM  with Ho = H - KH + 1, Wo = W - KW + 1
    _, cin, H, W = x_ref.shape
    _, cout, Ho, Wo = o_ref.shape

    # One f32 accumulator plane per output channel (trace-time unrolled; tiny).
    accs = [jnp.zeros((Ho, Wo), dtype=jnp.float32) for _ in range(cout)]

    # VALID conv == sum over (ci, kh, kw) of the shifted input window times a
    # scalar weight. Each window is read once directly from the ref (static
    # slices), then accumulated into all Cout channel planes with scalar weights
    # from SMEM — pure scalar*vector VALU work, lane-dense along W.
    for ci in range(cin):
        for kh in range(KH):
            for kw in range(KW):
                patch = x_ref[0, ci, kh:kh + Ho, kw:kw + Wo].astype(jnp.float32)
                for c in range(cout):
                    widx = ((c * cin + ci) * KH + kh) * KW + kw
                    accs[c] = accs[c] + patch * w_ref[widx]

    for c in range(cout):
        o_ref[0, c, :, :] = (accs[c] + b_ref[c]).astype(o_ref.dtype)


def lcj_conv_forward(x_nchw, weight_oihw, bias):
    """Forward pass of LCJ_conv.

    x_nchw:      (N, 3, H, W)  float32  (PyTorch NCHW — used natively, no transpose)
    weight_oihw: (6, 3, 3, 3)  float32  (PyTorch OIHW)
    bias:        (6,)          float32
    returns:     (N, 6, H-2, W-2) float32 (NCHW), identical to nn.Conv2d output.
    """
    N, Cin, H, W = x_nchw.shape
    assert Cin == C_IN
    Ho, Wo = H - KH + 1, W - KW + 1

    w_flat = weight_oihw.reshape(-1)  # (Cout*Cin*KH*KW,) in OIHW row-major order

    return pl.pallas_call(
        conv2d_valid_kernel,
        out_shape=jax.ShapeDtypeStruct((N, C_OUT, Ho, Wo), x_nchw.dtype),
        grid=(N,),
        in_specs=[
            pl.BlockSpec((1, C_IN, H, W), lambda n: (n, 0, 0, 0)),
            pl.BlockSpec(memory_space=pltpu.MemorySpace.SMEM),
            pl.BlockSpec(memory_space=pltpu.MemorySpace.SMEM),
        ],
        out_specs=pl.BlockSpec((1, C_OUT, Ho, Wo), lambda n: (n, 0, 0, 0)),
        compiler_params=pltpu.CompilerParams(
            dimension_semantics=("parallel",),
        ),
    )(x_nchw, w_flat, bias)


if __name__ == "__main__":
    key = jax.random.PRNGKey(0)
    kx, kw, kb = jax.random.split(key, 3)

    # Small shapes consistent with the module: batch=2, channels=3, spatial=16.
    N, H, W = 2, 16, 16
    x = jax.random.normal(kx, (N, C_IN, H, W), dtype=jnp.float32)

    # Deterministic parameter init mirroring PyTorch Conv2d defaults:
    # U(-1/sqrt(fan_in), 1/sqrt(fan_in)) with fan_in = Cin * KH * KW = 27.
    fan_in = C_IN * KH * KW
    bound = 1.0 / (fan_in ** 0.5)
    weight = jax.random.uniform(kw, (C_OUT, C_IN, KH, KW), jnp.float32, -bound, bound)
    bias = jax.random.uniform(kb, (C_OUT,), jnp.float32, -bound, bound)

    out = jax.block_until_ready(lcj_conv_forward(x, weight, bias))

    # Reference check against XLA's conv (same semantics as torch Conv2d, VALID pad).
    ref = jax.lax.conv_general_dilated(
        x, weight, window_strides=(1, 1), padding="VALID",
        dimension_numbers=("NCHW", "OIHW", "NCHW"),
    ) + bias.reshape(1, C_OUT, 1, 1)

    assert out.shape == (N, C_OUT, H - 2, W - 2), out.shape
    assert jnp.allclose(out, ref, atol=1e-4, rtol=1e-4), float(jnp.abs(out - ref).max())

    print("KERNEL_OK")
</pallas_src>

<mosaic_0001>
module attributes {stable_mosaic.version = 11 : i64} {
  func.func @conv2d_valid_kernel(%arg0: i32, %arg1: memref<1x3x16x16xf32, #tpu.memory_space<vmem>>, %arg2: memref<162xf32, #tpu.memory_space<smem>>, %arg3: memref<6xf32, #tpu.memory_space<smem>>, %arg4: memref<1x6x14x14xf32, #tpu.memory_space<vmem>>) attributes {dimension_semantics = [#tpu.dimension_semantics<parallel>], iteration_bounds = array<i64: 2>, scalar_prefetch = 0 : i64, scratch_operands = 0 : i64, tpu.core_type = #tpu.core_type<tc>, window_params = [{transform_indices = @transform_0, window_bounds = array<i64: 1, 3, 16, 16>}, {transform_indices = @transform_1, window_bounds = array<i64: 162>}, {transform_indices = @transform_2, window_bounds = array<i64: 6>}, {transform_indices = @transform_3, window_bounds = array<i64: 1, 6, 14, 14>}]} {
    %cst = arith.constant 0.000000e+00 : f32
    %0 = vector.broadcast %cst : f32 to vector<14x14xf32>
    %cst_0 = arith.constant 0.000000e+00 : f32
    %1 = vector.broadcast %cst_0 : f32 to vector<14x14xf32>
    %cst_1 = arith.constant 0.000000e+00 : f32
    %2 = vector.broadcast %cst_1 : f32 to vector<14x14xf32>
    %cst_2 = arith.constant 0.000000e+00 : f32
    %3 = vector.broadcast %cst_2 : f32 to vector<14x14xf32>
    %cst_3 = arith.constant 0.000000e+00 : f32
    %4 = vector.broadcast %cst_3 : f32 to vector<14x14xf32>
    %cst_4 = arith.constant 0.000000e+00 : f32
    %5 = vector.broadcast %cst_4 : f32 to vector<14x14xf32>
    %c0 = arith.constant 0 : index
    %c0_5 = arith.constant 0 : index
    %c0_6 = arith.constant 0 : index
    %c0_7 = arith.constant 0 : index
    %6 = vector.load %arg1[%c0, %c0_5, %c0_6, %c0_7] : memref<1x3x16x16xf32, #tpu.memory_space<vmem>>, vector<1x1x14x14xf32>
    %7 = vector.shape_cast %6 : vector<1x1x14x14xf32> to vector<14x14xf32>
    %c0_8 = arith.constant 0 : index
    %8 = memref.load %arg2[%c0_8] : memref<162xf32, #tpu.memory_space<smem>>
    %9 = vector.broadcast %8 : f32 to vector<14x14xf32>
    %10 = arith.mulf %7, %9 : vector<14x14xf32>
    %11 = arith.addf %0, %10 : vector<14x14xf32>
    %c27 = arith.constant 27 : index
    %12 = memref.load %arg2[%c27] : memref<162xf32, #tpu.memory_space<smem>>
    %13 = vector.broadcast %12 : f32 to vector<14x14xf32>
    %14 = arith.mulf %7, %13 : vector<14x14xf32>
    %15 = arith.addf %1, %14 : vector<14x14xf32>
    %c54 = arith.constant 54 : index
    %16 = memref.load %arg2[%c54] : memref<162xf32, #tpu.memory_space<smem>>
    %17 = vector.broadcast %16 : f32 to vector<14x14xf32>
    %18 = arith.mulf %7, %17 : vector<14x14xf32>
    %19 = arith.addf %2, %18 : vector<14x14xf32>
    %c81 = arith.constant 81 : index
    %20 = memref.load %arg2[%c81] : memref<162xf32, #tpu.memory_space<smem>>
    %21 = vector.broadcast %20 : f32 to vector<14x14xf32>
    %22 = arith.mulf %7, %21 : vector<14x14xf32>
    %23 = arith.addf %3, %22 : vector<14x14xf32>
    %c108 = arith.constant 108 : index
    %24 = memref.load %arg2[%c108] : memref<162xf32, #tpu.memory_space<smem>>
    %25 = vector.broadcast %24 : f32 to vector<14x14xf32>
    %26 = arith.mulf %7, %25 : vector<14x14xf32>
    %27 = arith.addf %4, %26 : vector<14x14xf32>
    %c135 = arith.constant 135 : index
    %28 = memref.load %arg2[%c135] : memref<162xf32, #tpu.memory_space<smem>>
    %29 = vector.broadcast %28 : f32 to vector<14x14xf32>
    %30 = arith.mulf %7, %29 : vector<14x14xf32>
    %31 = arith.addf %5, %30 : vector<14x14xf32>
    %c0_9 = arith.constant 0 : index
    %c0_10 = arith.constant 0 : index
    %c0_11 = arith.constant 0 : index
    %c1 = arith.constant 1 : index
    %32 = vector.load %arg1[%c0_9, %c0_10, %c0_11, %c1] : memref<1x3x16x16xf32, #tpu.memory_space<vmem>>, vector<1x1x14x14xf32>
    %33 = vector.shape_cast %32 : vector<1x1x14x14xf32> to vector<14x14xf32>
    %c1_12 = arith.constant 1 : index
    %34 = memref.load %arg2[%c1_12] : memref<162xf32, #tpu.memory_space<smem>>
    %35 = vector.broadcast %34 : f32 to vector<14x14xf32>
    %36 = arith.mulf %33, %35 : vector<14x14xf32>
    %37 = arith.addf %11, %36 : vector<14x14xf32>
    %c28 = arith.constant 28 : index
    %38 = memref.load %arg2[%c28] : memref<162xf32, #tpu.memory_space<smem>>
    %39 = vector.broadcast %38 : f32 to vector<14x14xf32>
    %40 = arith.mulf %33, %39 : vector<14x14xf32>
    %41 = arith.addf %15, %40 : vector<14x14xf32>
    %c55 = arith.constant 55 : index
    %42 = memref.load %arg2[%c55] : memref<162xf32, #tpu.memory_space<smem>>
    %43 = vector.broadcast %42 : f32 to vector<14x14xf32>
    %44 = arith.mulf %33, %43 : vector<14x14xf32>
    %45 = arith.addf %19, %44 : vector<14x14xf32>
    %c82 = arith.constant 82 : index
    %46 = memref.load %arg2[%c82] : memref<162xf32, #tpu.memory_space<smem>>
    %47 = vector.broadcast %46 : f32 to vector<14x14xf32>
    %48 = arith.mulf %33, %47 : vector<14x14xf32>
    %49 = arith.addf %23, %48 : vector<14x14xf32>
    %c109 = arith.constant 109 : index
    %50 = memref.load %arg2[%c109] : memref<162xf32, #tpu.memory_space<smem>>
    %51 = vector.broadcast %50 : f32 to vector<14x14xf32>
    %52 = arith.mulf %33, %51 : vector<14x14xf32>
    %53 = arith.addf %27, %52 : vector<14x14xf32>
    %c136 = arith.constant 136 : index
    %54 = memref.load %arg2[%c136] : memref<162xf32, #tpu.memory_space<smem>>
    %55 = vector.broadcast %54 : f32 to vector<14x14xf32>
    %56 = arith.mulf %33, %55 : vector<14x14xf32>
    %57 = arith.addf %31, %56 : vector<14x14xf32>
    %c0_13 = arith.constant 0 : index
    %c0_14 = arith.constant 0 : index
    %c0_15 = arith.constant 0 : index
    %c2 = arith.constant 2 : index
    %58 = vector.load %arg1[%c0_13, %c0_14, %c0_15, %c2] : memref<1x3x16x16xf32, #tpu.memory_space<vmem>>, vector<1x1x14x14xf32>
    %59 = vector.shape_cast %58 : vector<1x1x14x14xf32> to vector<14x14xf32>
    %c2_16 = arith.constant 2 : index
    %60 = memref.load %arg2[%c2_16] : memref<162xf32, #tpu.memory_space<smem>>
    %61 = vector.broadcast %60 : f32 to vector<14x14xf32>
    %62 = arith.mulf %59, %61 : vector<14x14xf32>
    %63 = arith.addf %37, %62 : vector<14x14xf32>
    %c29 = arith.constant 29 : index
    %64 = memref.load %arg2[%c29] : memref<162xf32, #tpu.memory_space<smem>>
    %65 = vector.broadcast %64 : f32 to vector<14x14xf32>
    %66 = arith.mulf %59, %65 : vector<14x14xf32>
    %67 = arith.addf %41, %66 : vector<14x14xf32>
    %c56 = arith.constant 56 : index
    %68 = memref.load %arg2[%c56] : memref<162xf32, #tpu.memory_space<smem>>
    %69 = vector.broadcast %68 : f32 to vector<14x14xf32>
    %70 = arith.mulf %59, %69 : vector<14x14xf32>
    %71 = arith.addf %45, %70 : vector<14x14xf32>
    %c83 = arith.constant 83 : index
    %72 = memref.load %arg2[%c83] : memref<162xf32, #tpu.memory_space<smem>>
    %73 = vector.broadcast %72 : f32 to vector<14x14xf32>
    %74 = arith.mulf %59, %73 : vector<14x14xf32>
    %75 = arith.addf %49, %74 : vector<14x14xf32>
    %c110 = arith.constant 110 : index
    %76 = memref.load %arg2[%c110] : memref<162xf32, #tpu.memory_space<smem>>
    %77 = vector.broadcast %76 : f32 to vector<14x14xf32>
    %78 = arith.mulf %59, %77 : vector<14x14xf32>
    %79 = arith.addf %53, %78 : vector<14x14xf32>
    %c137 = arith.constant 137 : index
    %80 = memref.load %arg2[%c137] : memref<162xf32, #tpu.memory_space<smem>>
    %81 = vector.broadcast %80 : f32 to vector<14x14xf32>
    %82 = arith.mulf %59, %81 : vector<14x14xf32>
    %83 = arith.addf %57, %82 : vector<14x14xf32>
    %c0_17 = arith.constant 0 : index
    %c0_18 = arith.constant 0 : index
    %c1_19 = arith.constant 1 : index
    %c0_20 = arith.constant 0 : index
    %84 = vector.load %arg1[%c0_17, %c0_18, %c1_19, %c0_20] : memref<1x3x16x16xf32, #tpu.memory_space<vmem>>, vector<1x1x14x14xf32>
    %85 = vector.shape_cast %84 : vector<1x1x14x14xf32> to vector<14x14xf32>
    %c3 = arith.constant 3 : index
    %86 = memref.load %arg2[%c3] : memref<162xf32, #tpu.memory_space<smem>>
    %87 = vector.broadcast %86 : f32 to vector<14x14xf32>
    %88 = arith.mulf %85, %87 : vector<14x14xf32>
    %89 = arith.addf %63, %88 : vector<14x14xf32>
    %c30 = arith.constant 30 : index
    %90 = memref.load %arg2[%c30] : memref<162xf32, #tpu.memory_space<smem>>
    %91 = vector.broadcast %90 : f32 to vector<14x14xf32>
    %92 = arith.mulf %85, %91 : vector<14x14xf32>
    %93 = arith.addf %67, %92 : vector<14x14xf32>
    %c57 = arith.constant 57 : index
    %94 = memref.load %arg2[%c57] : memref<162xf32, #tpu.memory_space<smem>>
    %95 = vector.broadcast %94 : f32 to vector<14x14xf32>
    %96 = arith.mulf %85, %95 : vector<14x14xf32>
    %97 = arith.addf %71, %96 : vector<14x14xf32>
    %c84 = arith.constant 84 : index
    %98 = memref.load %arg2[%c84] : memref<162xf32, #tpu.memory_space<smem>>
    %99 = vector.broadcast %98 : f32 to vector<14x14xf32>
    %100 = arith.mulf %85, %99 : vector<14x14xf32>
    %101 = arith.addf %75, %100 : vector<14x14xf32>
    %c111 = arith.constant 111 : index
    %102 = memref.load %arg2[%c111] : memref<162xf32, #tpu.memory_space<smem>>
    %103 = vector.broadcast %102 : f32 to vector<14x14xf32>
    %104 = arith.mulf %85, %103 : vector<14x14xf32>
    %105 = arith.addf %79, %104 : vector<14x14xf32>
    %c138 = arith.constant 138 : index
    %106 = memref.load %arg2[%c138] : memref<162xf32, #tpu.memory_space<smem>>
    %107 = vector.broadcast %106 : f32 to vector<14x14xf32>
    %108 = arith.mulf %85, %107 : vector<14x14xf32>
    %109 = arith.addf %83, %108 : vector<14x14xf32>
    %c0_21 = arith.constant 0 : index
    %c0_22 = arith.constant 0 : index
    %c1_23 = arith.constant 1 : index
    %c1_24 = arith.constant 1 : index
    %110 = vector.load %arg1[%c0_21, %c0_22, %c1_23, %c1_24] : memref<1x3x16x16xf32, #tpu.memory_space<vmem>>, vector<1x1x14x14xf32>
    %111 = vector.shape_cast %110 : vector<1x1x14x14xf32> to vector<14x14xf32>
    %c4 = arith.constant 4 : index
    %112 = memref.load %arg2[%c4] : memref<162xf32, #tpu.memory_space<smem>>
    %113 = vector.broadcast %112 : f32 to vector<14x14xf32>
    %114 = arith.mulf %111, %113 : vector<14x14xf32>
    %115 = arith.addf %89, %114 : vector<14x14xf32>
    %c31 = arith.constant 31 : index
    %116 = memref.load %arg2[%c31] : memref<162xf32, #tpu.memory_space<smem>>
    %117 = vector.broadcast %116 : f32 to vector<14x14xf32>
    %118 = arith.mulf %111, %117 : vector<14x14xf32>
    %119 = arith.addf %93, %118 : vector<14x14xf32>
    %c58 = arith.constant 58 : index
    %120 = memref.load %arg2[%c58] : memref<162xf32, #tpu.memory_space<smem>>
    %121 = vector.broadcast %120 : f32 to vector<14x14xf32>
    %122 = arith.mulf %111, %121 : vector<14x14xf32>
    %123 = arith.addf %97, %122 : vector<14x14xf32>
    %c85 = arith.constant 85 : index
    %124 = memref.load %arg2[%c85] : memref<162xf32, #tpu.memory_space<smem>>
    %125 = vector.broadcast %124 : f32 to vector<14x14xf32>
    %126 = arith.mulf %111, %125 : vector<14x14xf32>
    %127 = arith.addf %101, %126 : vector<14x14xf32>
    %c112 = arith.constant 112 : index
    %128 = memref.load %arg2[%c112] : memref<162xf32, #tpu.memory_space<smem>>
    %129 = vector.broadcast %128 : f32 to vector<14x14xf32>
    %130 = arith.mulf %111, %129 : vector<14x14xf32>
    %131 = arith.addf %105, %130 : vector<14x14xf32>
    %c139 = arith.constant 139 : index
    %132 = memref.load %arg2[%c139] : memref<162xf32, #tpu.memory_space<smem>>
    %133 = vector.broadcast %132 : f32 to vector<14x14xf32>
    %134 = arith.mulf %111, %133 : vector<14x14xf32>
    %135 = arith.addf %109, %134 : vector<14x14xf32>
    %c0_25 = arith.constant 0 : index
    %c0_26 = arith.constant 0 : index
    %c1_27 = arith.constant 1 : index
    %c2_28 = arith.constant 2 : index
    %136 = vector.load %arg1[%c0_25, %c0_26, %c1_27, %c2_28] : memref<1x3x16x16xf32, #tpu.memory_space<vmem>>, vector<1x1x14x14xf32>
    %137 = vector.shape_cast %136 : vector<1x1x14x14xf32> to vector<14x14xf32>
    %c5 = arith.constant 5 : index
    %138 = memref.load %arg2[%c5] : memref<162xf32, #tpu.memory_space<smem>>
    %139 = vector.broadcast %138 : f32 to vector<14x14xf32>
    %140 = arith.mulf %137, %139 : vector<14x14xf32>
    %141 = arith.addf %115, %140 : vector<14x14xf32>
    %c32 = arith.constant 32 : index
    %142 = memref.load %arg2[%c32] : memref<162xf32, #tpu.memory_space<smem>>
    %143 = vector.broadcast %142 : f32 to vector<14x14xf32>
    %144 = arith.mulf %137, %143 : vector<14x14xf32>
    %145 = arith.addf %119, %144 : vector<14x14xf32>
    %c59 = arith.constant 59 : index
    %146 = memref.load %arg2[%c59] : memref<162xf32, #tpu.memory_space<smem>>
    %147 = vector.broadcast %146 : f32 to vector<14x14xf32>
    %148 = arith.mulf %137, %147 : vector<14x14xf32>
    %149 = arith.addf %123, %148 : vector<14x14xf32>
    %c86 = arith.constant 86 : index
    %150 = memref.load %arg2[%c86] : memref<162xf32, #tpu.memory_space<smem>>
    %151 = vector.broadcast %150 : f32 to vector<14x14xf32>
    %152 = arith.mulf %137, %151 : vector<14x14xf32>
    %153 = arith.addf %127, %152 : vector<14x14xf32>
    %c113 = arith.constant 113 : index
    %154 = memref.load %arg2[%c113] : memref<162xf32, #tpu.memory_space<smem>>
    %155 = vector.broadcast %154 : f32 to vector<14x14xf32>
    %156 = arith.mulf %137, %155 : vector<14x14xf32>
    %157 = arith.addf %131, %156 : vector<14x14xf32>
    %c140 = arith.constant 140 : index
    %158 = memref.load %arg2[%c140] : memref<162xf32, #tpu.memory_space<smem>>
    %159 = vector.broadcast %158 : f32 to vector<14x14xf32>
    %160 = arith.mulf %137, %159 : vector<14x14xf32>
    %161 = arith.addf %135, %160 : vector<14x14xf32>
    %c0_29 = arith.constant 0 : index
    %c0_30 = arith.constant 0 : index
    %c2_31 = arith.constant 2 : index
    %c0_32 = arith.constant 0 : index
    %162 = vector.load %arg1[%c0_29, %c0_30, %c2_31, %c0_32] : memref<1x3x16x16xf32, #tpu.memory_space<vmem>>, vector<1x1x14x14xf32>
    %163 = vector.shape_cast %162 : vector<1x1x14x14xf32> to vector<14x14xf32>
    %c6 = arith.constant 6 : index
    %164 = memref.load %arg2[%c6] : memref<162xf32, #tpu.memory_space<smem>>
    %165 = vector.broadcast %164 : f32 to vector<14x14xf32>
    %166 = arith.mulf %163, %165 : vector<14x14xf32>
    %167 = arith.addf %141, %166 : vector<14x14xf32>
    %c33 = arith.constant 33 : index
    %168 = memref.load %arg2[%c33] : memref<162xf32, #tpu.memory_space<smem>>
    %169 = vector.broadcast %168 : f32 to vector<14x14xf32>
    %170 = arith.mulf %163, %169 : vector<14x14xf32>
    %171 = arith.addf %145, %170 : vector<14x14xf32>
    %c60 = arith.constant 60 : index
    %172 = memref.load %arg2[%c60] : memref<162xf32, #tpu.memory_space<smem>>
    %173 = vector.broadcast %172 : f32 to vector<14x14xf32>
    %174 = arith.mulf %163, %173 : vector<14x14xf32>
    %175 = arith.addf %149, %174 : vector<14x14xf32>
    %c87 = arith.constant 87 : index
    %176 = memref.load %arg2[%c87] : memref<162xf32, #tpu.memory_space<smem>>
    %177 = vector.broadcast %176 : f32 to vector<14x14xf32>
    %178 = arith.mulf %163, %177 : vector<14x14xf32>
    %179 = arith.addf %153, %178 : vector<14x14xf32>
    %c114 = arith.constant 114 : index
    %180 = memref.load %arg2[%c114] : memref<162xf32, #tpu.memory_space<smem>>
    %181 = vector.broadcast %180 : f32 to vector<14x14xf32>
    %182 = arith.mulf %163, %181 : vector<14x14xf32>
    %183 = arith.addf %157, %182 : vector<14x14xf32>
    %c141 = arith.constant 141 : index
    %184 = memref.load %arg2[%c141] : memref<162xf32, #tpu.memory_space<smem>>
    %185 = vector.broadcast %184 : f32 to vector<14x14xf32>
    %186 = arith.mulf %163, %185 : vector<14x14xf32>
    %187 = arith.addf %161, %186 : vector<14x14xf32>
    %c0_33 = arith.constant 0 : index
    %c0_34 = arith.constant 0 : index
    %c2_35 = arith.constant 2 : index
    %c1_36 = arith.constant 1 : index
    %188 = vector.load %arg1[%c0_33, %c0_34, %c2_35, %c1_36] : memref<1x3x16x16xf32, #tpu.memory_space<vmem>>, vector<1x1x14x14xf32>
    %189 = vector.shape_cast %188 : vector<1x1x14x14xf32> to vector<14x14xf32>
    %c7 = arith.constant 7 : index
    %190 = memref.load %arg2[%c7] : memref<162xf32, #tpu.memory_space<smem>>
    %191 = vector.broadcast %190 : f32 to vector<14x14xf32>
    %192 = arith.mulf %189, %191 : vector<14x14xf32>
    %193 = arith.addf %167, %192 : vector<14x14xf32>
    %c34 = arith.constant 34 : index
    %194 = memref.load %arg2[%c34] : memref<162xf32, #tpu.memory_space<smem>>
    %195 = vector.broadcast %194 : f32 to vector<14x14xf32>
    %196 = arith.mulf %189, %195 : vector<14x14xf32>
    %197 = arith.addf %171, %196 : vector<14x14xf32>
    %c61 = arith.constant 61 : index
    %198 = memref.load %arg2[%c61] : memref<162xf32, #tpu.memory_space<smem>>
    %199 = vector.broadcast %198 : f32 to vector<14x14xf32>
    %200 = arith.mulf %189, %199 : vector<14x14xf32>
    %201 = arith.addf %175, %200 : vector<14x14xf32>
    %c88 = arith.constant 88 : index
    %202 = memref.load %arg2[%c88] : memref<162xf32, #tpu.memory_space<smem>>
    %203 = vector.broadcast %202 : f32 to vector<14x14xf32>
    %204 = arith.mulf %189, %203 : vector<14x14xf32>
    %205 = arith.addf %179, %204 : vector<14x14xf32>
    %c115 = arith.constant 115 : index
    %206 = memref.load %arg2[%c115] : memref<162xf32, #tpu.memory_space<smem>>
    %207 = vector.broadcast %206 : f32 to vector<14x14xf32>
    %208 = arith.mulf %189, %207 : vector<14x14xf32>
    %209 = arith.addf %183, %208 : vector<14x14xf32>
    %c142 = arith.constant 142 : index
    %210 = memref.load %arg2[%c142] : memref<162xf32, #tpu.memory_space<smem>>
    %211 = vector.broadcast %210 : f32 to vector<14x14xf32>
    %212 = arith.mulf %189, %211 : vector<14x14xf32>
    %213 = arith.addf %187, %212 : vector<14x14xf32>
    %c0_37 = arith.constant 0 : index
    %c0_38 = arith.constant 0 : index
    %c2_39 = arith.constant 2 : index
    %c2_40 = arith.constant 2 : index
    %214 = vector.load %arg1[%c0_37, %c0_38, %c2_39, %c2_40] : memref<1x3x16x16xf32, #tpu.memory_space<vmem>>, vector<1x1x14x14xf32>
    %215 = vector.shape_cast %214 : vector<1x1x14x14xf32> to vector<14x14xf32>
    %c8 = arith.constant 8 : index
    %216 = memref.load %arg2[%c8] : memref<162xf32, #tpu.memory_space<smem>>
    %217 = vector.broadcast %216 : f32 to vector<14x14xf32>
    %218 = arith.mulf %215, %217 : vector<14x14xf32>
    %219 = arith.addf %193, %218 : vector<14x14xf32>
    %c35 = arith.constant 35 : index
    %220 = memref.load %arg2[%c35] : memref<162xf32, #tpu.memory_space<smem>>
    %221 = vector.broadcast %220 : f32 to vector<14x14xf32>
    %222 = arith.mulf %215, %221 : vector<14x14xf32>
    %223 = arith.addf %197, %222 : vector<14x14xf32>
    %c62 = arith.constant 62 : index
    %224 = memref.load %arg2[%c62] : memref<162xf32, #tpu.memory_space<smem>>
    %225 = vector.broadcast %224 : f32 to vector<14x14xf32>
    %226 = arith.mulf %215, %225 : vector<14x14xf32>
    %227 = arith.addf %201, %226 : vector<14x14xf32>
    %c89 = arith.constant 89 : index
    %228 = memref.load %arg2[%c89] : memref<162xf32, #tpu.memory_space<smem>>
    %229 = vector.broadcast %228 : f32 to vector<14x14xf32>
    %230 = arith.mulf %215, %229 : vector<14x14xf32>
    %231 = arith.addf %205, %230 : vector<14x14xf32>
    %c116 = arith.constant 116 : index
    %232 = memref.load %arg2[%c116] : memref<162xf32, #tpu.memory_space<smem>>
    %233 = vector.broadcast %232 : f32 to vector<14x14xf32>
    %234 = arith.mulf %215, %233 : vector<14x14xf32>
    %235 = arith.addf %209, %234 : vector<14x14xf32>
    %c143 = arith.constant 143 : index
    %236 = memref.load %arg2[%c143] : memref<162xf32, #tpu.memory_space<smem>>
    %237 = vector.broadcast %236 : f32 to vector<14x14xf32>
    %238 = arith.mulf %215, %237 : vector<14x14xf32>
    %239 = arith.addf %213, %238 : vector<14x14xf32>
    %c0_41 = arith.constant 0 : index
    %c1_42 = arith.constant 1 : index
    %c0_43 = arith.constant 0 : index
    %c0_44 = arith.constant 0 : index
    %240 = vector.load %arg1[%c0_41, %c1_42, %c0_43, %c0_44] : memref<1x3x16x16xf32, #tpu.memory_space<vmem>>, vector<1x1x14x14xf32>
    %241 = vector.shape_cast %240 : vector<1x1x14x14xf32> to vector<14x14xf32>
    %c9 = arith.constant 9 : index
    %242 = memref.load %arg2[%c9] : memref<162xf32, #tpu.memory_space<smem>>
    %243 = vector.broadcast %242 : f32 to vector<14x14xf32>
    %244 = arith.mulf %241, %243 : vector<14x14xf32>
    %245 = arith.addf %219, %244 : vector<14x14xf32>
    %c36 = arith.constant 36 : index
    %246 = memref.load %arg2[%c36] : memref<162xf32, #tpu.memory_space<smem>>
    %247 = vector.broadcast %246 : f32 to vector<14x14xf32>
    %248 = arith.mulf %241, %247 : vector<14x14xf32>
    %249 = arith.addf %223, %248 : vector<14x14xf32>
    %c63 = arith.constant 63 : index
    %250 = memref.load %arg2[%c63] : memref<162xf32, #tpu.memory_space<smem>>
    %251 = vector.broadcast %250 : f32 to vector<14x14xf32>
    %252 = arith.mulf %241, %251 : vector<14x14xf32>
    %253 = arith.addf %227, %252 : vector<14x14xf32>
    %c90 = arith.constant 90 : index
    %254 = memref.load %arg2[%c90] : memref<162xf32, #tpu.memory_space<smem>>
    %255 = vector.broadcast %254 : f32 to vector<14x14xf32>
    %256 = arith.mulf %241, %255 : vector<14x14xf32>
    %257 = arith.addf %231, %256 : vector<14x14xf32>
    %c117 = arith.constant 117 : index
    %258 = memref.load %arg2[%c117] : memref<162xf32, #tpu.memory_space<smem>>
    %259 = vector.broadcast %258 : f32 to vector<14x14xf32>
    %260 = arith.mulf %241, %259 : vector<14x14xf32>
    %261 = arith.addf %235, %260 : vector<14x14xf32>
    %c144 = arith.constant 144 : index
    %262 = memref.load %arg2[%c144] : memref<162xf32, #tpu.memory_space<smem>>
    %263 = vector.broadcast %262 : f32 to vector<14x14xf32>
    %264 = arith.mulf %241, %263 : vector<14x14xf32>
    %265 = arith.addf %239, %264 : vector<14x14xf32>
    %c0_45 = arith.constant 0 : index
    %c1_46 = arith.constant 1 : index
    %c0_47 = arith.constant 0 : index
    %c1_48 = arith.constant 1 : index
    %266 = vector.load %arg1[%c0_45, %c1_46, %c0_47, %c1_48] : memref<1x3x16x16xf32, #tpu.memory_space<vmem>>, vector<1x1x14x14xf32>
    %267 = vector.shape_cast %266 : vector<1x1x14x14xf32> to vector<14x14xf32>
    %c10 = arith.constant 10 : index
    %268 = memref.load %arg2[%c10] : memref<162xf32, #tpu.memory_space<smem>>
    %269 = vector.broadcast %268 : f32 to vector<14x14xf32>
    %270 = arith.mulf %267, %269 : vector<14x14xf32>
    %271 = arith.addf %245, %270 : vector<14x14xf32>
    %c37 = arith.constant 37 : index
    %272 = memref.load %arg2[%c37] : memref<162xf32, #tpu.memory_space<smem>>
    %273 = vector.broadcast %272 : f32 to vector<14x14xf32>
    %274 = arith.mulf %267, %273 : vector<14x14xf32>
    %275 = arith.addf %249, %274 : vector<14x14xf32>
    %c64 = arith.constant 64 : index
    %276 = memref.load %arg2[%c64] : memref<162xf32, #tpu.memory_space<smem>>
    %277 = vector.broadcast %276 : f32 to vector<14x14xf32>
    %278 = arith.mulf %267, %277 : vector<14x14xf32>
    %279 = arith.addf %253, %278 : vector<14x14xf32>
    %c91 = arith.constant 91 : index
    %280 = memref.load %arg2[%c91] : memref<162xf32, #tpu.memory_space<smem>>
    %281 = vector.broadcast %280 : f32 to vector<14x14xf32>
    %282 = arith.mulf %267, %281 : vector<14x14xf32>
    %283 = arith.addf %257, %282 : vector<14x14xf32>
    %c118 = arith.constant 118 : index
    %284 = memref.load %arg2[%c118] : memref<162xf32, #tpu.memory_space<smem>>
    %285 = vector.broadcast %284 : f32 to vector<14x14xf32>
    %286 = arith.mulf %267, %285 : vector<14x14xf32>
    %287 = arith.addf %261, %286 : vector<14x14xf32>
    %c145 = arith.constant 145 : index
    %288 = memref.load %arg2[%c145] : memref<162xf32, #tpu.memory_space<smem>>
    %289 = vector.broadcast %288 : f32 to vector<14x14xf32>
    %290 = arith.mulf %267, %289 : vector<14x14xf32>
    %291 = arith.addf %265, %290 : vector<14x14xf32>
    %c0_49 = arith.constant 0 : index
    %c1_50 = arith.constant 1 : index
    %c0_51 = arith.constant 0 : index
    %c2_52 = arith.constant 2 : index
    %292 = vector.load %arg1[%c0_49, %c1_50, %c0_51, %c2_52] : memref<1x3x16x16xf32, #tpu.memory_space<vmem>>, vector<1x1x14x14xf32>
    %293 = vector.shape_cast %292 : vector<1x1x14x14xf32> to vector<14x14xf32>
    %c11 = arith.constant 11 : index
    %294 = memref.load %arg2[%c11] : memref<162xf32, #tpu.memory_space<smem>>
    %295 = vector.broadcast %294 : f32 to vector<14x14xf32>
    %296 = arith.mulf %293, %295 : vector<14x14xf32>
    %297 = arith.addf %271, %296 : vector<14x14xf32>
    %c38 = arith.constant 38 : index
    %298 = memref.load %arg2[%c38] : memref<162xf32, #tpu.memory_space<smem>>
    %299 = vector.broadcast %298 : f32 to vector<14x14xf32>
    %300 = arith.mulf %293, %299 : vector<14x14xf32>
    %301 = arith.addf %275, %300 : vector<14x14xf32>
    %c65 = arith.constant 65 : index
    %302 = memref.load %arg2[%c65] : memref<162xf32, #tpu.memory_space<smem>>
    %303 = vector.broadcast %302 : f32 to vector<14x14xf32>
    %304 = arith.mulf %293, %303 : vector<14x14xf32>
    %305 = arith.addf %279, %304 : vector<14x14xf32>
    %c92 = arith.constant 92 : index
    %306 = memref.load %arg2[%c92] : memref<162xf32, #tpu.memory_space<smem>>
    %307 = vector.broadcast %306 : f32 to vector<14x14xf32>
    %308 = arith.mulf %293, %307 : vector<14x14xf32>
    %309 = arith.addf %283, %308 : vector<14x14xf32>
    %c119 = arith.constant 119 : index
    %310 = memref.load %arg2[%c119] : memref<162xf32, #tpu.memory_space<smem>>
    %311 = vector.broadcast %310 : f32 to vector<14x14xf32>
    %312 = arith.mulf %293, %311 : vector<14x14xf32>
    %313 = arith.addf %287, %312 : vector<14x14xf32>
    %c146 = arith.constant 146 : index
    %314 = memref.load %arg2[%c146] : memref<162xf32, #tpu.memory_space<smem>>
    %315 = vector.broadcast %314 : f32 to vector<14x14xf32>
    %316 = arith.mulf %293, %315 : vector<14x14xf32>
    %317 = arith.addf %291, %316 : vector<14x14xf32>
    %c0_53 = arith.constant 0 : index
    %c1_54 = arith.constant 1 : index
    %c1_55 = arith.constant 1 : index
    %c0_56 = arith.constant 0 : index
    %318 = vector.load %arg1[%c0_53, %c1_54, %c1_55, %c0_56] : memref<1x3x16x16xf32, #tpu.memory_space<vmem>>, vector<1x1x14x14xf32>
    %319 = vector.shape_cast %318 : vector<1x1x14x14xf32> to vector<14x14xf32>
    %c12 = arith.constant 12 : index
    %320 = memref.load %arg2[%c12] : memref<162xf32, #tpu.memory_space<smem>>
    %321 = vector.broadcast %320 : f32 to vector<14x14xf32>
    %322 = arith.mulf %319, %321 : vector<14x14xf32>
    %323 = arith.addf %297, %322 : vector<14x14xf32>
    %c39 = arith.constant 39 : index
    %324 = memref.load %arg2[%c39] : memref<162xf32, #tpu.memory_space<smem>>
    %325 = vector.broadcast %324 : f32 to vector<14x14xf32>
    %326 = arith.mulf %319, %325 : vector<14x14xf32>
    %327 = arith.addf %301, %326 : vector<14x14xf32>
    %c66 = arith.constant 66 : index
    %328 = memref.load %arg2[%c66] : memref<162xf32, #tpu.memory_space<smem>>
    %329 = vector.broadcast %328 : f32 to vector<14x14xf32>
    %330 = arith.mulf %319, %329 : vector<14x14xf32>
    %331 = arith.addf %305, %330 : vector<14x14xf32>
    %c93 = arith.constant 93 : index
    %332 = memref.load %arg2[%c93] : memref<162xf32, #tpu.memory_space<smem>>
    %333 = vector.broadcast %332 : f32 to vector<14x14xf32>
    %334 = arith.mulf %319, %333 : vector<14x14xf32>
    %335 = arith.addf %309, %334 : vector<14x14xf32>
    %c120 = arith.constant 120 : index
    %336 = memref.load %arg2[%c120] : memref<162xf32, #tpu.memory_space<smem>>
    %337 = vector.broadcast %336 : f32 to vector<14x14xf32>
    %338 = arith.mulf %319, %337 : vector<14x14xf32>
    %339 = arith.addf %313, %338 : vector<14x14xf32>
    %c147 = arith.constant 147 : index
    %340 = memref.load %arg2[%c147] : memref<162xf32, #tpu.memory_space<smem>>
    %341 = vector.broadcast %340 : f32 to vector<14x14xf32>
    %342 = arith.mulf %319, %341 : vector<14x14xf32>
    %343 = arith.addf %317, %342 : vector<14x14xf32>
    %c0_57 = arith.constant 0 : index
    %c1_58 = arith.constant 1 : index
    %c1_59 = arith.constant 1 : index
    %c1_60 = arith.constant 1 : index
    %344 = vector.load %arg1[%c0_57, %c1_58, %c1_59, %c1_60] : memref<1x3x16x16xf32, #tpu.memory_space<vmem>>, vector<1x1x14x14xf32>
    %345 = vector.shape_cast %344 : vector<1x1x14x14xf32> to vector<14x14xf32>
    %c13 = arith.constant 13 : index
    %346 = memref.load %arg2[%c13] : memref<162xf32, #tpu.memory_space<smem>>
    %347 = vector.broadcast %346 : f32 to vector<14x14xf32>
    %348 = arith.mulf %345, %347 : vector<14x14xf32>
    %349 = arith.addf %323, %348 : vector<14x14xf32>
    %c40 = arith.constant 40 : index
    %350 = memref.load %arg2[%c40] : memref<162xf32, #tpu.memory_space<smem>>
    %351 = vector.broadcast %350 : f32 to vector<14x14xf32>
    %352 = arith.mulf %345, %351 : vector<14x14xf32>
    %353 = arith.addf %327, %352 : vector<14x14xf32>
    %c67 = arith.constant 67 : index
    %354 = memref.load %arg2[%c67] : memref<162xf32, #tpu.memory_space<smem>>
    %355 = vector.broadcast %354 : f32 to vector<14x14xf32>
    %356 = arith.mulf %345, %355 : vector<14x14xf32>
    %357 = arith.addf %331, %356 : vector<14x14xf32>
    %c94 = arith.constant 94 : index
    %358 = memref.load %arg2[%c94] : memref<162xf32, #tpu.memory_space<smem>>
    %359 = vector.broadcast %358 : f32 to vector<14x14xf32>
    %360 = arith.mulf %345, %359 : vector<14x14xf32>
    %361 = arith.addf %335, %360 : vector<14x14xf32>
    %c121 = arith.constant 121 : index
    %362 = memref.load %arg2[%c121] : memref<162xf32, #tpu.memory_space<smem>>
    %363 = vector.broadcast %362 : f32 to vector<14x14xf32>
    %364 = arith.mulf %345, %363 : vector<14x14xf32>
    %365 = arith.addf %339, %364 : vector<14x14xf32>
    %c148 = arith.constant 148 : index
    %366 = memref.load %arg2[%c148] : memref<162xf32, #tpu.memory_space<smem>>
    %367 = vector.broadcast %366 : f32 to vector<14x14xf32>
    %368 = arith.mulf %345, %367 : vector<14x14xf32>
    %369 = arith.addf %343, %368 : vector<14x14xf32>
    %c0_61 = arith.constant 0 : index
    %c1_62 = arith.constant 1 : index
    %c1_63 = arith.constant 1 : index
    %c2_64 = arith.constant 2 : index
    %370 = vector.load %arg1[%c0_61, %c1_62, %c1_63, %c2_64] : memref<1x3x16x16xf32, #tpu.memory_space<vmem>>, vector<1x1x14x14xf32>
    %371 = vector.shape_cast %370 : vector<1x1x14x14xf32> to vector<14x14xf32>
    %c14 = arith.constant 14 : index
    %372 = memref.load %arg2[%c14] : memref<162xf32, #tpu.memory_space<smem>>
    %373 = vector.broadcast %372 : f32 to vector<14x14xf32>
    %374 = arith.mulf %371, %373 : vector<14x14xf32>
    %375 = arith.addf %349, %374 : vector<14x14xf32>
    %c41 = arith.constant 41 : index
    %376 = memref.load %arg2[%c41] : memref<162xf32, #tpu.memory_space<smem>>
    %377 = vector.broadcast %376 : f32 to vector<14x14xf32>
    %378 = arith.mulf %371, %377 : vector<14x14xf32>
    %379 = arith.addf %353, %378 : vector<14x14xf32>
    %c68 = arith.constant 68 : index
    %380 = memref.load %arg2[%c68] : memref<162xf32, #tpu.memory_space<smem>>
    %381 = vector.broadcast %380 : f32 to vector<14x14xf32>
    %382 = arith.mulf %371, %381 : vector<14x14xf32>
    %383 = arith.addf %357, %382 : vector<14x14xf32>
    %c95 = arith.constant 95 : index
    %384 = memref.load %arg2[%c95] : memref<162xf32, #tpu.memory_space<smem>>
    %385 = vector.broadcast %384 : f32 to vector<14x14xf32>
    %386 = arith.mulf %371, %385 : vector<14x14xf32>
    %387 = arith.addf %361, %386 : vector<14x14xf32>
    %c122 = arith.constant 122 : index
    %388 = memref.load %arg2[%c122] : memref<162xf32, #tpu.memory_space<smem>>
    %389 = vector.broadcast %388 : f32 to vector<14x14xf32>
    %390 = arith.mulf %371, %389 : vector<14x14xf32>
    %391 = arith.addf %365, %390 : vector<14x14xf32>
    %c149 = arith.constant 149 : index
    %392 = memref.load %arg2[%c149] : memref<162xf32, #tpu.memory_space<smem>>
    %393 = vector.broadcast %392 : f32 to vector<14x14xf32>
    %394 = arith.mulf %371, %393 : vector<14x14xf32>
    %395 = arith.addf %369, %394 : vector<14x14xf32>
    %c0_65 = arith.constant 0 : index
    %c1_66 = arith.constant 1 : index
    %c2_67 = arith.constant 2 : index
    %c0_68 = arith.constant 0 : index
    %396 = vector.load %arg1[%c0_65, %c1_66, %c2_67, %c0_68] : memref<1x3x16x16xf32, #tpu.memory_space<vmem>>, vector<1x1x14x14xf32>
    %397 = vector.shape_cast %396 : vector<1x1x14x14xf32> to vector<14x14xf32>
    %c15 = arith.constant 15 : index
    %398 = memref.load %arg2[%c15] : memref<162xf32, #tpu.memory_space<smem>>
    %399 = vector.broadcast %398 : f32 to vector<14x14xf32>
    %400 = arith.mulf %397, %399 : vector<14x14xf32>
    %401 = arith.addf %375, %400 : vector<14x14xf32>
    %c42 = arith.constant 42 : index
    %402 = memref.load %arg2[%c42] : memref<162xf32, #tpu.memory_space<smem>>
    %403 = vector.broadcast %402 : f32 to vector<14x14xf32>
    %404 = arith.mulf %397, %403 : vector<14x14xf32>
    %405 = arith.addf %379, %404 : vector<14x14xf32>
    %c69 = arith.constant 69 : index
    %406 = memref.load %arg2[%c69] : memref<162xf32, #tpu.memory_space<smem>>
    %407 = vector.broadcast %406 : f32 to vector<14x14xf32>
    %408 = arith.mulf %397, %407 : vector<14x14xf32>
    %409 = arith.addf %383, %408 : vector<14x14xf32>
    %c96 = arith.constant 96 : index
    %410 = memref.load %arg2[%c96] : memref<162xf32, #tpu.memory_space<smem>>
    %411 = vector.broadcast %410 : f32 to vector<14x14xf32>
    %412 = arith.mulf %397, %411 : vector<14x14xf32>
    %413 = arith.addf %387, %412 : vector<14x14xf32>
    %c123 = arith.constant 123 : index
    %414 = memref.load %arg2[%c123] : memref<162xf32, #tpu.memory_space<smem>>
    %415 = vector.broadcast %414 : f32 to vector<14x14xf32>
    %416 = arith.mulf %397, %415 : vector<14x14xf32>
    %417 = arith.addf %391, %416 : vector<14x14xf32>
    %c150 = arith.constant 150 : index
    %418 = memref.load %arg2[%c150] : memref<162xf32, #tpu.memory_space<smem>>
    %419 = vector.broadcast %418 : f32 to vector<14x14xf32>
    %420 = arith.mulf %397, %419 : vector<14x14xf32>
    %421 = arith.addf %395, %420 : vector<14x14xf32>
    %c0_69 = arith.constant 0 : index
    %c1_70 = arith.constant 1 : index
    %c2_71 = arith.constant 2 : index
    %c1_72 = arith.constant 1 : index
    %422 = vector.load %arg1[%c0_69, %c1_70, %c2_71, %c1_72] : memref<1x3x16x16xf32, #tpu.memory_space<vmem>>, vector<1x1x14x14xf32>
    %423 = vector.shape_cast %422 : vector<1x1x14x14xf32> to vector<14x14xf32>
    %c16 = arith.constant 16 : index
    %424 = memref.load %arg2[%c16] : memref<162xf32, #tpu.memory_space<smem>>
    %425 = vector.broadcast %424 : f32 to vector<14x14xf32>
    %426 = arith.mulf %423, %425 : vector<14x14xf32>
    %427 = arith.addf %401, %426 : vector<14x14xf32>
    %c43 = arith.constant 43 : index
    %428 = memref.load %arg2[%c43] : memref<162xf32, #tpu.memory_space<smem>>
    %429 = vector.broadcast %428 : f32 to vector<14x14xf32>
    %430 = arith.mulf %423, %429 : vector<14x14xf32>
    %431 = arith.addf %405, %430 : vector<14x14xf32>
    %c70 = arith.constant 70 : index
    %432 = memref.load %arg2[%c70] : memref<162xf32, #tpu.memory_space<smem>>
    %433 = vector.broadcast %432 : f32 to vector<14x14xf32>
    %434 = arith.mulf %423, %433 : vector<14x14xf32>
    %435 = arith.addf %409, %434 : vector<14x14xf32>
    %c97 = arith.constant 97 : index
    %436 = memref.load %arg2[%c97] : memref<162xf32, #tpu.memory_space<smem>>
    %437 = vector.broadcast %436 : f32 to vector<14x14xf32>
    %438 = arith.mulf %423, %437 : vector<14x14xf32>
    %439 = arith.addf %413, %438 : vector<14x14xf32>
    %c124 = arith.constant 124 : index
    %440 = memref.load %arg2[%c124] : memref<162xf32, #tpu.memory_space<smem>>
    %441 = vector.broadcast %440 : f32 to vector<14x14xf32>
    %442 = arith.mulf %423, %441 : vector<14x14xf32>
    %443 = arith.addf %417, %442 : vector<14x14xf32>
    %c151 = arith.constant 151 : index
    %444 = memref.load %arg2[%c151] : memref<162xf32, #tpu.memory_space<smem>>
    %445 = vector.broadcast %444 : f32 to vector<14x14xf32>
    %446 = arith.mulf %423, %445 : vector<14x14xf32>
    %447 = arith.addf %421, %446 : vector<14x14xf32>
    %c0_73 = arith.constant 0 : index
    %c1_74 = arith.constant 1 : index
    %c2_75 = arith.constant 2 : index
    %c2_76 = arith.constant 2 : index
    %448 = vector.load %arg1[%c0_73, %c1_74, %c2_75, %c2_76] : memref<1x3x16x16xf32, #tpu.memory_space<vmem>>, vector<1x1x14x14xf32>
    %449 = vector.shape_cast %448 : vector<1x1x14x14xf32> to vector<14x14xf32>
    %c17 = arith.constant 17 : index
    %450 = memref.load %arg2[%c17] : memref<162xf32, #tpu.memory_space<smem>>
    %451 = vector.broadcast %450 : f32 to vector<14x14xf32>
    %452 = arith.mulf %449, %451 : vector<14x14xf32>
    %453 = arith.addf %427, %452 : vector<14x14xf32>
    %c44 = arith.constant 44 : index
    %454 = memref.load %arg2[%c44] : memref<162xf32, #tpu.memory_space<smem>>
    %455 = vector.broadcast %454 : f32 to vector<14x14xf32>
    %456 = arith.mulf %449, %455 : vector<14x14xf32>
    %457 = arith.addf %431, %456 : vector<14x14xf32>
    %c71 = arith.constant 71 : index
    %458 = memref.load %arg2[%c71] : memref<162xf32, #tpu.memory_space<smem>>
    %459 = vector.broadcast %458 : f32 to vector<14x14xf32>
    %460 = arith.mulf %449, %459 : vector<14x14xf32>
    %461 = arith.addf %435, %460 : vector<14x14xf32>
    %c98 = arith.constant 98 : index
    %462 = memref.load %arg2[%c98] : memref<162xf32, #tpu.memory_space<smem>>
    %463 = vector.broadcast %462 : f32 to vector<14x14xf32>
    %464 = arith.mulf %449, %463 : vector<14x14xf32>
    %465 = arith.addf %439, %464 : vector<14x14xf32>
    %c125 = arith.constant 125 : index
    %466 = memref.load %arg2[%c125] : memref<162xf32, #tpu.memory_space<smem>>
    %467 = vector.broadcast %466 : f32 to vector<14x14xf32>
    %468 = arith.mulf %449, %467 : vector<14x14xf32>
    %469 = arith.addf %443, %468 : vector<14x14xf32>
    %c152 = arith.constant 152 : index
    %470 = memref.load %arg2[%c152] : memref<162xf32, #tpu.memory_space<smem>>
    %471 = vector.broadcast %470 : f32 to vector<14x14xf32>
    %472 = arith.mulf %449, %471 : vector<14x14xf32>
    %473 = arith.addf %447, %472 : vector<14x14xf32>
    %c0_77 = arith.constant 0 : index
    %c2_78 = arith.constant 2 : index
    %c0_79 = arith.constant 0 : index
    %c0_80 = arith.constant 0 : index
    %474 = vector.load %arg1[%c0_77, %c2_78, %c0_79, %c0_80] : memref<1x3x16x16xf32, #tpu.memory_space<vmem>>, vector<1x1x14x14xf32>
    %475 = vector.shape_cast %474 : vector<1x1x14x14xf32> to vector<14x14xf32>
    %c18 = arith.constant 18 : index
    %476 = memref.load %arg2[%c18] : memref<162xf32, #tpu.memory_space<smem>>
    %477 = vector.broadcast %476 : f32 to vector<14x14xf32>
    %478 = arith.mulf %475, %477 : vector<14x14xf32>
    %479 = arith.addf %453, %478 : vector<14x14xf32>
    %c45 = arith.constant 45 : index
    %480 = memref.load %arg2[%c45] : memref<162xf32, #tpu.memory_space<smem>>
    %481 = vector.broadcast %480 : f32 to vector<14x14xf32>
    %482 = arith.mulf %475, %481 : vector<14x14xf32>
    %483 = arith.addf %457, %482 : vector<14x14xf32>
    %c72 = arith.constant 72 : index
    %484 = memref.load %arg2[%c72] : memref<162xf32, #tpu.memory_space<smem>>
    %485 = vector.broadcast %484 : f32 to vector<14x14xf32>
    %486 = arith.mulf %475, %485 : vector<14x14xf32>
    %487 = arith.addf %461, %486 : vector<14x14xf32>
    %c99 = arith.constant 99 : index
    %488 = memref.load %arg2[%c99] : memref<162xf32, #tpu.memory_space<smem>>
    %489 = vector.broadcast %488 : f32 to vector<14x14xf32>
    %490 = arith.mulf %475, %489 : vector<14x14xf32>
    %491 = arith.addf %465, %490 : vector<14x14xf32>
    %c126 = arith.constant 126 : index
    %492 = memref.load %arg2[%c126] : memref<162xf32, #tpu.memory_space<smem>>
    %493 = vector.broadcast %492 : f32 to vector<14x14xf32>
    %494 = arith.mulf %475, %493 : vector<14x14xf32>
    %495 = arith.addf %469, %494 : vector<14x14xf32>
    %c153 = arith.constant 153 : index
    %496 = memref.load %arg2[%c153] : memref<162xf32, #tpu.memory_space<smem>>
    %497 = vector.broadcast %496 : f32 to vector<14x14xf32>
    %498 = arith.mulf %475, %497 : vector<14x14xf32>
    %499 = arith.addf %473, %498 : vector<14x14xf32>
    %c0_81 = arith.constant 0 : index
    %c2_82 = arith.constant 2 : index
    %c0_83 = arith.constant 0 : index
    %c1_84 = arith.constant 1 : index
    %500 = vector.load %arg1[%c0_81, %c2_82, %c0_83, %c1_84] : memref<1x3x16x16xf32, #tpu.memory_space<vmem>>, vector<1x1x14x14xf32>
    %501 = vector.shape_cast %500 : vector<1x1x14x14xf32> to vector<14x14xf32>
    %c19 = arith.constant 19 : index
    %502 = memref.load %arg2[%c19] : memref<162xf32, #tpu.memory_space<smem>>
    %503 = vector.broadcast %502 : f32 to vector<14x14xf32>
    %504 = arith.mulf %501, %503 : vector<14x14xf32>
    %505 = arith.addf %479, %504 : vector<14x14xf32>
    %c46 = arith.constant 46 : index
    %506 = memref.load %arg2[%c46] : memref<162xf32, #tpu.memory_space<smem>>
    %507 = vector.broadcast %506 : f32 to vector<14x14xf32>
    %508 = arith.mulf %501, %507 : vector<14x14xf32>
    %509 = arith.addf %483, %508 : vector<14x14xf32>
    %c73 = arith.constant 73 : index
    %510 = memref.load %arg2[%c73] : memref<162xf32, #tpu.memory_space<smem>>
    %511 = vector.broadcast %510 : f32 to vector<14x14xf32>
    %512 = arith.mulf %501, %511 : vector<14x14xf32>
    %513 = arith.addf %487, %512 : vector<14x14xf32>
    %c100 = arith.constant 100 : index
    %514 = memref.load %arg2[%c100] : memref<162xf32, #tpu.memory_space<smem>>
    %515 = vector.broadcast %514 : f32 to vector<14x14xf32>
    %516 = arith.mulf %501, %515 : vector<14x14xf32>
    %517 = arith.addf %491, %516 : vector<14x14xf32>
    %c127 = arith.constant 127 : index
    %518 = memref.load %arg2[%c127] : memref<162xf32, #tpu.memory_space<smem>>
    %519 = vector.broadcast %518 : f32 to vector<14x14xf32>
    %520 = arith.mulf %501, %519 : vector<14x14xf32>
    %521 = arith.addf %495, %520 : vector<14x14xf32>
    %c154 = arith.constant 154 : index
    %522 = memref.load %arg2[%c154] : memref<162xf32, #tpu.memory_space<smem>>
    %523 = vector.broadcast %522 : f32 to vector<14x14xf32>
    %524 = arith.mulf %501, %523 : vector<14x14xf32>
    %525 = arith.addf %499, %524 : vector<14x14xf32>
    %c0_85 = arith.constant 0 : index
    %c2_86 = arith.constant 2 : index
    %c0_87 = arith.constant 0 : index
    %c2_88 = arith.constant 2 : index
    %526 = vector.load %arg1[%c0_85, %c2_86, %c0_87, %c2_88] : memref<1x3x16x16xf32, #tpu.memory_space<vmem>>, vector<1x1x14x14xf32>
    %527 = vector.shape_cast %526 : vector<1x1x14x14xf32> to vector<14x14xf32>
    %c20 = arith.constant 20 : index
    %528 = memref.load %arg2[%c20] : memref<162xf32, #tpu.memory_space<smem>>
    %529 = vector.broadcast %528 : f32 to vector<14x14xf32>
    %530 = arith.mulf %527, %529 : vector<14x14xf32>
    %531 = arith.addf %505, %530 : vector<14x14xf32>
    %c47 = arith.constant 47 : index
    %532 = memref.load %arg2[%c47] : memref<162xf32, #tpu.memory_space<smem>>
    %533 = vector.broadcast %532 : f32 to vector<14x14xf32>
    %534 = arith.mulf %527, %533 : vector<14x14xf32>
    %535 = arith.addf %509, %534 : vector<14x14xf32>
    %c74 = arith.constant 74 : index
    %536 = memref.load %arg2[%c74] : memref<162xf32, #tpu.memory_space<smem>>
    %537 = vector.broadcast %536 : f32 to vector<14x14xf32>
    %538 = arith.mulf %527, %537 : vector<14x14xf32>
    %539 = arith.addf %513, %538 : vector<14x14xf32>
    %c101 = arith.constant 101 : index
    %540 = memref.load %arg2[%c101] : memref<162xf32, #tpu.memory_space<smem>>
    %541 = vector.broadcast %540 : f32 to vector<14x14xf32>
    %542 = arith.mulf %527, %541 : vector<14x14xf32>
    %543 = arith.addf %517, %542 : vector<14x14xf32>
    %c128 = arith.constant 128 : index
    %544 = memref.load %arg2[%c128] : memref<162xf32, #tpu.memory_space<smem>>
    %545 = vector.broadcast %544 : f32 to vector<14x14xf32>
    %546 = arith.mulf %527, %545 : vector<14x14xf32>
    %547 = arith.addf %521, %546 : vector<14x14xf32>
    %c155 = arith.constant 155 : index
    %548 = memref.load %arg2[%c155] : memref<162xf32, #tpu.memory_space<smem>>
    %549 = vector.broadcast %548 : f32 to vector<14x14xf32>
    %550 = arith.mulf %527, %549 : vector<14x14xf32>
    %551 = arith.addf %525, %550 : vector<14x14xf32>
    %c0_89 = arith.constant 0 : index
    %c2_90 = arith.constant 2 : index
    %c1_91 = arith.constant 1 : index
    %c0_92 = arith.constant 0 : index
    %552 = vector.load %arg1[%c0_89, %c2_90, %c1_91, %c0_92] : memref<1x3x16x16xf32, #tpu.memory_space<vmem>>, vector<1x1x14x14xf32>
    %553 = vector.shape_cast %552 : vector<1x1x14x14xf32> to vector<14x14xf32>
    %c21 = arith.constant 21 : index
    %554 = memref.load %arg2[%c21] : memref<162xf32, #tpu.memory_space<smem>>
    %555 = vector.broadcast %554 : f32 to vector<14x14xf32>
    %556 = arith.mulf %553, %555 : vector<14x14xf32>
    %557 = arith.addf %531, %556 : vector<14x14xf32>
    %c48 = arith.constant 48 : index
    %558 = memref.load %arg2[%c48] : memref<162xf32, #tpu.memory_space<smem>>
    %559 = vector.broadcast %558 : f32 to vector<14x14xf32>
    %560 = arith.mulf %553, %559 : vector<14x14xf32>
    %561 = arith.addf %535, %560 : vector<14x14xf32>
    %c75 = arith.constant 75 : index
    %562 = memref.load %arg2[%c75] : memref<162xf32, #tpu.memory_space<smem>>
    %563 = vector.broadcast %562 : f32 to vector<14x14xf32>
    %564 = arith.mulf %553, %563 : vector<14x14xf32>
    %565 = arith.addf %539, %564 : vector<14x14xf32>
    %c102 = arith.constant 102 : index
    %566 = memref.load %arg2[%c102] : memref<162xf32, #tpu.memory_space<smem>>
    %567 = vector.broadcast %566 : f32 to vector<14x14xf32>
    %568 = arith.mulf %553, %567 : vector<14x14xf32>
    %569 = arith.addf %543, %568 : vector<14x14xf32>
    %c129 = arith.constant 129 : index
    %570 = memref.load %arg2[%c129] : memref<162xf32, #tpu.memory_space<smem>>
    %571 = vector.broadcast %570 : f32 to vector<14x14xf32>
    %572 = arith.mulf %553, %571 : vector<14x14xf32>
    %573 = arith.addf %547, %572 : vector<14x14xf32>
    %c156 = arith.constant 156 : index
    %574 = memref.load %arg2[%c156] : memref<162xf32, #tpu.memory_space<smem>>
    %575 = vector.broadcast %574 : f32 to vector<14x14xf32>
    %576 = arith.mulf %553, %575 : vector<14x14xf32>
    %577 = arith.addf %551, %576 : vector<14x14xf32>
    %c0_93 = arith.constant 0 : index
    %c2_94 = arith.constant 2 : index
    %c1_95 = arith.constant 1 : index
    %c1_96 = arith.constant 1 : index
    %578 = vector.load %arg1[%c0_93, %c2_94, %c1_95, %c1_96] : memref<1x3x16x16xf32, #tpu.memory_space<vmem>>, vector<1x1x14x14xf32>
    %579 = vector.shape_cast %578 : vector<1x1x14x14xf32> to vector<14x14xf32>
    %c22 = arith.constant 22 : index
    %580 = memref.load %arg2[%c22] : memref<162xf32, #tpu.memory_space<smem>>
    %581 = vector.broadcast %580 : f32 to vector<14x14xf32>
    %582 = arith.mulf %579, %581 : vector<14x14xf32>
    %583 = arith.addf %557, %582 : vector<14x14xf32>
    %c49 = arith.constant 49 : index
    %584 = memref.load %arg2[%c49] : memref<162xf32, #tpu.memory_space<smem>>
    %585 = vector.broadcast %584 : f32 to vector<14x14xf32>
    %586 = arith.mulf %579, %585 : vector<14x14xf32>
    %587 = arith.addf %561, %586 : vector<14x14xf32>
    %c76 = arith.constant 76 : index
    %588 = memref.load %arg2[%c76] : memref<162xf32, #tpu.memory_space<smem>>
    %589 = vector.broadcast %588 : f32 to vector<14x14xf32>
    %590 = arith.mulf %579, %589 : vector<14x14xf32>
    %591 = arith.addf %565, %590 : vector<14x14xf32>
    %c103 = arith.constant 103 : index
    %592 = memref.load %arg2[%c103] : memref<162xf32, #tpu.memory_space<smem>>
    %593 = vector.broadcast %592 : f32 to vector<14x14xf32>
    %594 = arith.mulf %579, %593 : vector<14x14xf32>
    %595 = arith.addf %569, %594 : vector<14x14xf32>
    %c130 = arith.constant 130 : index
    %596 = memref.load %arg2[%c130] : memref<162xf32, #tpu.memory_space<smem>>
    %597 = vector.broadcast %596 : f32 to vector<14x14xf32>
    %598 = arith.mulf %579, %597 : vector<14x14xf32>
    %599 = arith.addf %573, %598 : vector<14x14xf32>
    %c157 = arith.constant 157 : index
    %600 = memref.load %arg2[%c157] : memref<162xf32, #tpu.memory_space<smem>>
    %601 = vector.broadcast %600 : f32 to vector<14x14xf32>
    %602 = arith.mulf %579, %601 : vector<14x14xf32>
    %603 = arith.addf %577, %602 : vector<14x14xf32>
    %c0_97 = arith.constant 0 : index
    %c2_98 = arith.constant 2 : index
    %c1_99 = arith.constant 1 : index
    %c2_100 = arith.constant 2 : index
    %604 = vector.load %arg1[%c0_97, %c2_98, %c1_99, %c2_100] : memref<1x3x16x16xf32, #tpu.memory_space<vmem>>, vector<1x1x14x14xf32>
    %605 = vector.shape_cast %604 : vector<1x1x14x14xf32> to vector<14x14xf32>
    %c23 = arith.constant 23 : index
    %606 = memref.load %arg2[%c23] : memref<162xf32, #tpu.memory_space<smem>>
    %607 = vector.broadcast %606 : f32 to vector<14x14xf32>
    %608 = arith.mulf %605, %607 : vector<14x14xf32>
    %609 = arith.addf %583, %608 : vector<14x14xf32>
    %c50 = arith.constant 50 : index
    %610 = memref.load %arg2[%c50] : memref<162xf32, #tpu.memory_space<smem>>
    %611 = vector.broadcast %610 : f32 to vector<14x14xf32>
    %612 = arith.mulf %605, %611 : vector<14x14xf32>
    %613 = arith.addf %587, %612 : vector<14x14xf32>
    %c77 = arith.constant 77 : index
    %614 = memref.load %arg2[%c77] : memref<162xf32, #tpu.memory_space<smem>>
    %615 = vector.broadcast %614 : f32 to vector<14x14xf32>
    %616 = arith.mulf %605, %615 : vector<14x14xf32>
    %617 = arith.addf %591, %616 : vector<14x14xf32>
    %c104 = arith.constant 104 : index
    %618 = memref.load %arg2[%c104] : memref<162xf32, #tpu.memory_space<smem>>
    %619 = vector.broadcast %618 : f32 to vector<14x14xf32>
    %620 = arith.mulf %605, %619 : vector<14x14xf32>
    %621 = arith.addf %595, %620 : vector<14x14xf32>
    %c131 = arith.constant 131 : index
    %622 = memref.load %arg2[%c131] : memref<162xf32, #tpu.memory_space<smem>>
    %623 = vector.broadcast %622 : f32 to vector<14x14xf32>
    %624 = arith.mulf %605, %623 : vector<14x14xf32>
    %625 = arith.addf %599, %624 : vector<14x14xf32>
    %c158 = arith.constant 158 : index
    %626 = memref.load %arg2[%c158] : memref<162xf32, #tpu.memory_space<smem>>
    %627 = vector.broadcast %626 : f32 to vector<14x14xf32>
    %628 = arith.mulf %605, %627 : vector<14x14xf32>
    %629 = arith.addf %603, %628 : vector<14x14xf32>
    %c0_101 = arith.constant 0 : index
    %c2_102 = arith.constant 2 : index
    %c2_103 = arith.constant 2 : index
    %c0_104 = arith.constant 0 : index
    %630 = vector.load %arg1[%c0_101, %c2_102, %c2_103, %c0_104] : memref<1x3x16x16xf32, #tpu.memory_space<vmem>>, vector<1x1x14x14xf32>
    %631 = vector.shape_cast %630 : vector<1x1x14x14xf32> to vector<14x14xf32>
    %c24 = arith.constant 24 : index
    %632 = memref.load %arg2[%c24] : memref<162xf32, #tpu.memory_space<smem>>
    %633 = vector.broadcast %632 : f32 to vector<14x14xf32>
    %634 = arith.mulf %631, %633 : vector<14x14xf32>
    %635 = arith.addf %609, %634 : vector<14x14xf32>
    %c51 = arith.constant 51 : index
    %636 = memref.load %arg2[%c51] : memref<162xf32, #tpu.memory_space<smem>>
    %637 = vector.broadcast %636 : f32 to vector<14x14xf32>
    %638 = arith.mulf %631, %637 : vector<14x14xf32>
    %639 = arith.addf %613, %638 : vector<14x14xf32>
    %c78 = arith.constant 78 : index
    %640 = memref.load %arg2[%c78] : memref<162xf32, #tpu.memory_space<smem>>
    %641 = vector.broadcast %640 : f32 to vector<14x14xf32>
    %642 = arith.mulf %631, %641 : vector<14x14xf32>
    %643 = arith.addf %617, %642 : vector<14x14xf32>
    %c105 = arith.constant 105 : index
    %644 = memref.load %arg2[%c105] : memref<162xf32, #tpu.memory_space<smem>>
    %645 = vector.broadcast %644 : f32 to vector<14x14xf32>
    %646 = arith.mulf %631, %645 : vector<14x14xf32>
    %647 = arith.addf %621, %646 : vector<14x14xf32>
    %c132 = arith.constant 132 : index
    %648 = memref.load %arg2[%c132] : memref<162xf32, #tpu.memory_space<smem>>
    %649 = vector.broadcast %648 : f32 to vector<14x14xf32>
    %650 = arith.mulf %631, %649 : vector<14x14xf32>
    %651 = arith.addf %625, %650 : vector<14x14xf32>
    %c159 = arith.constant 159 : index
    %652 = memref.load %arg2[%c159] : memref<162xf32, #tpu.memory_space<smem>>
    %653 = vector.broadcast %652 : f32 to vector<14x14xf32>
    %654 = arith.mulf %631, %653 : vector<14x14xf32>
    %655 = arith.addf %629, %654 : vector<14x14xf32>
    %c0_105 = arith.constant 0 : index
    %c2_106 = arith.constant 2 : index
    %c2_107 = arith.constant 2 : index
    %c1_108 = arith.constant 1 : index
    %656 = vector.load %arg1[%c0_105, %c2_106, %c2_107, %c1_108] : memref<1x3x16x16xf32, #tpu.memory_space<vmem>>, vector<1x1x14x14xf32>
    %657 = vector.shape_cast %656 : vector<1x1x14x14xf32> to vector<14x14xf32>
    %c25 = arith.constant 25 : index
    %658 = memref.load %arg2[%c25] : memref<162xf32, #tpu.memory_space<smem>>
    %659 = vector.broadcast %658 : f32 to vector<14x14xf32>
    %660 = arith.mulf %657, %659 : vector<14x14xf32>
    %661 = arith.addf %635, %660 : vector<14x14xf32>
    %c52 = arith.constant 52 : index
    %662 = memref.load %arg2[%c52] : memref<162xf32, #tpu.memory_space<smem>>
    %663 = vector.broadcast %662 : f32 to vector<14x14xf32>
    %664 = arith.mulf %657, %663 : vector<14x14xf32>
    %665 = arith.addf %639, %664 : vector<14x14xf32>
    %c79 = arith.constant 79 : index
    %666 = memref.load %arg2[%c79] : memref<162xf32, #tpu.memory_space<smem>>
    %667 = vector.broadcast %666 : f32 to vector<14x14xf32>
    %668 = arith.mulf %657, %667 : vector<14x14xf32>
    %669 = arith.addf %643, %668 : vector<14x14xf32>
    %c106 = arith.constant 106 : index
    %670 = memref.load %arg2[%c106] : memref<162xf32, #tpu.memory_space<smem>>
    %671 = vector.broadcast %670 : f32 to vector<14x14xf32>
    %672 = arith.mulf %657, %671 : vector<14x14xf32>
    %673 = arith.addf %647, %672 : vector<14x14xf32>
    %c133 = arith.constant 133 : index
    %674 = memref.load %arg2[%c133] : memref<162xf32, #tpu.memory_space<smem>>
    %675 = vector.broadcast %674 : f32 to vector<14x14xf32>
    %676 = arith.mulf %657, %675 : vector<14x14xf32>
    %677 = arith.addf %651, %676 : vector<14x14xf32>
    %c160 = arith.constant 160 : index
    %678 = memref.load %arg2[%c160] : memref<162xf32, #tpu.memory_space<smem>>
    %679 = vector.broadcast %678 : f32 to vector<14x14xf32>
    %680 = arith.mulf %657, %679 : vector<14x14xf32>
    %681 = arith.addf %655, %680 : vector<14x14xf32>
    %c0_109 = arith.constant 0 : index
    %c2_110 = arith.constant 2 : index
    %c2_111 = arith.constant 2 : index
    %c2_112 = arith.constant 2 : index
    %682 = vector.load %arg1[%c0_109, %c2_110, %c2_111, %c2_112] : memref<1x3x16x16xf32, #tpu.memory_space<vmem>>, vector<1x1x14x14xf32>
    %683 = vector.shape_cast %682 : vector<1x1x14x14xf32> to vector<14x14xf32>
    %c26 = arith.constant 26 : index
    %684 = memref.load %arg2[%c26] : memref<162xf32, #tpu.memory_space<smem>>
    %685 = vector.broadcast %684 : f32 to vector<14x14xf32>
    %686 = arith.mulf %683, %685 : vector<14x14xf32>
    %687 = arith.addf %661, %686 : vector<14x14xf32>
    %c53 = arith.constant 53 : index
    %688 = memref.load %arg2[%c53] : memref<162xf32, #tpu.memory_space<smem>>
    %689 = vector.broadcast %688 : f32 to vector<14x14xf32>
    %690 = arith.mulf %683, %689 : vector<14x14xf32>
    %691 = arith.addf %665, %690 : vector<14x14xf32>
    %c80 = arith.constant 80 : index
    %692 = memref.load %arg2[%c80] : memref<162xf32, #tpu.memory_space<smem>>
    %693 = vector.broadcast %692 : f32 to vector<14x14xf32>
    %694 = arith.mulf %683, %693 : vector<14x14xf32>
    %695 = arith.addf %669, %694 : vector<14x14xf32>
    %c107 = arith.constant 107 : index
    %696 = memref.load %arg2[%c107] : memref<162xf32, #tpu.memory_space<smem>>
    %697 = vector.broadcast %696 : f32 to vector<14x14xf32>
    %698 = arith.mulf %683, %697 : vector<14x14xf32>
    %699 = arith.addf %673, %698 : vector<14x14xf32>
    %c134 = arith.constant 134 : index
    %700 = memref.load %arg2[%c134] : memref<162xf32, #tpu.memory_space<smem>>
    %701 = vector.broadcast %700 : f32 to vector<14x14xf32>
    %702 = arith.mulf %683, %701 : vector<14x14xf32>
    %703 = arith.addf %677, %702 : vector<14x14xf32>
    %c161 = arith.constant 161 : index
    %704 = memref.load %arg2[%c161] : memref<162xf32, #tpu.memory_space<smem>>
    %705 = vector.broadcast %704 : f32 to vector<14x14xf32>
    %706 = arith.mulf %683, %705 : vector<14x14xf32>
    %707 = arith.addf %681, %706 : vector<14x14xf32>
    %c0_113 = arith.constant 0 : index
    %708 = memref.load %arg3[%c0_113] : memref<6xf32, #tpu.memory_space<smem>>
    %709 = vector.broadcast %708 : f32 to vector<14x14xf32>
    %710 = arith.addf %687, %709 : vector<14x14xf32>
    %c0_114 = arith.constant 0 : index
    %c0_115 = arith.constant 0 : index
    %c0_116 = arith.constant 0 : index
    %c0_117 = arith.constant 0 : index
    %711 = vector.load %arg4[%c0_114, %c0_115, %c0_116, %c0_117] : memref<1x6x14x14xf32, #tpu.memory_space<vmem>>, vector<1x1x14x14xf32>
    %712 = vector.shape_cast %711 : vector<1x1x14x14xf32> to vector<14x14xf32>
    %713 = vector.shape_cast %710 : vector<14x14xf32> to vector<1x1x14x14xf32>
    tpu.vector_store %arg4[%c0_114, %c0_115, %c0_116, %c0_117], %713 {strides = array<i32>} : memref<1x6x14x14xf32, #tpu.memory_space<vmem>>, vector<1x1x14x14xf32>,
    %c1_118 = arith.constant 1 : index
    %714 = memref.load %arg3[%c1_118] : memref<6xf32, #tpu.memory_space<smem>>
    %715 = vector.broadcast %714 : f32 to vector<14x14xf32>
    %716 = arith.addf %691, %715 : vector<14x14xf32>
    %c0_119 = arith.constant 0 : index
    %c1_120 = arith.constant 1 : index
    %c0_121 = arith.constant 0 : index
    %c0_122 = arith.constant 0 : index
    %717 = vector.load %arg4[%c0_119, %c1_120, %c0_121, %c0_122] : memref<1x6x14x14xf32, #tpu.memory_space<vmem>>, vector<1x1x14x14xf32>
    %718 = vector.shape_cast %717 : vector<1x1x14x14xf32> to vector<14x14xf32>
    %719 = vector.shape_cast %716 : vector<14x14xf32> to vector<1x1x14x14xf32>
    tpu.vector_store %arg4[%c0_119, %c1_120, %c0_121, %c0_122], %719 {strides = array<i32>} : memref<1x6x14x14xf32, #tpu.memory_space<vmem>>, vector<1x1x14x14xf32>,
    %c2_123 = arith.constant 2 : index
    %720 = memref.load %arg3[%c2_123] : memref<6xf32, #tpu.memory_space<smem>>
    %721 = vector.broadcast %720 : f32 to vector<14x14xf32>
    %722 = arith.addf %695, %721 : vector<14x14xf32>
    %c0_124 = arith.constant 0 : index
    %c2_125 = arith.constant 2 : index
    %c0_126 = arith.constant 0 : index
    %c0_127 = arith.constant 0 : index
    %723 = vector.load %arg4[%c0_124, %c2_125, %c0_126, %c0_127] : memref<1x6x14x14xf32, #tpu.memory_space<vmem>>, vector<1x1x14x14xf32>
    %724 = vector.shape_cast %723 : vector<1x1x14x14xf32> to vector<14x14xf32>
    %725 = vector.shape_cast %722 : vector<14x14xf32> to vector<1x1x14x14xf32>
    tpu.vector_store %arg4[%c0_124, %c2_125, %c0_126, %c0_127], %725 {strides = array<i32>} : memref<1x6x14x14xf32, #tpu.memory_space<vmem>>, vector<1x1x14x14xf32>,
    %c3_128 = arith.constant 3 : index
    %726 = memref.load %arg3[%c3_128] : memref<6xf32, #tpu.memory_space<smem>>
    %727 = vector.broadcast %726 : f32 to vector<14x14xf32>
    %728 = arith.addf %699, %727 : vector<14x14xf32>
    %c0_129 = arith.constant 0 : index
    %c3_130 = arith.constant 3 : index
    %c0_131 = arith.constant 0 : index
    %c0_132 = arith.constant 0 : index
    %729 = vector.load %arg4[%c0_129, %c3_130, %c0_131, %c0_132] : memref<1x6x14x14xf32, #tpu.memory_space<vmem>>, vector<1x1x14x14xf32>
    %730 = vector.shape_cast %729 : vector<1x1x14x14xf32> to vector<14x14xf32>
    %731 = vector.shape_cast %728 : vector<14x14xf32> to vector<1x1x14x14xf32>
    tpu.vector_store %arg4[%c0_129, %c3_130, %c0_131, %c0_132], %731 {strides = array<i32>} : memref<1x6x14x14xf32, #tpu.memory_space<vmem>>, vector<1x1x14x14xf32>,
    %c4_133 = arith.constant 4 : index
    %732 = memref.load %arg3[%c4_133] : memref<6xf32, #tpu.memory_space<smem>>
    %733 = vector.broadcast %732 : f32 to vector<14x14xf32>
    %734 = arith.addf %703, %733 : vector<14x14xf32>
    %c0_134 = arith.constant 0 : index
    %c4_135 = arith.constant 4 : index
    %c0_136 = arith.constant 0 : index
    %c0_137 = arith.constant 0 : index
    %735 = vector.load %arg4[%c0_134, %c4_135, %c0_136, %c0_137] : memref<1x6x14x14xf32, #tpu.memory_space<vmem>>, vector<1x1x14x14xf32>
    %736 = vector.shape_cast %735 : vector<1x1x14x14xf32> to vector<14x14xf32>
    %737 = vector.shape_cast %734 : vector<14x14xf32> to vector<1x1x14x14xf32>
    tpu.vector_store %arg4[%c0_134, %c4_135, %c0_136, %c0_137], %737 {strides = array<i32>} : memref<1x6x14x14xf32, #tpu.memory_space<vmem>>, vector<1x1x14x14xf32>,
    %c5_138 = arith.constant 5 : index
    %738 = memref.load %arg3[%c5_138] : memref<6xf32, #tpu.memory_space<smem>>
    %739 = vector.broadcast %738 : f32 to vector<14x14xf32>
    %740 = arith.addf %707, %739 : vector<14x14xf32>
    %c0_139 = arith.constant 0 : index
    %c5_140 = arith.constant 5 : index
    %c0_141 = arith.constant 0 : index
    %c0_142 = arith.constant 0 : index
    %741 = vector.load %arg4[%c0_139, %c5_140, %c0_141, %c0_142] : memref<1x6x14x14xf32, #tpu.memory_space<vmem>>, vector<1x1x14x14xf32>
    %742 = vector.shape_cast %741 : vector<1x1x14x14xf32> to vector<14x14xf32>
    %743 = vector.shape_cast %740 : vector<14x14xf32> to vector<1x1x14x14xf32>
    tpu.vector_store %arg4[%c0_139, %c5_140, %c0_141, %c0_142], %743 {strides = array<i32>} : memref<1x6x14x14xf32, #tpu.memory_space<vmem>>, vector<1x1x14x14xf32>,
    return
  }
  func.func @transform_0(%arg0: i32) -> (i32, i32, i32, i32) {
    %c0_i32 = arith.constant 0 : i32
    %c0_i32_0 = arith.constant 0 : i32
    %c0_i32_1 = arith.constant 0 : i32
    %c0_i32_2 = arith.constant 0 : i32
    return %arg0, %c0_i32, %c0_i32_0, %c0_i32_1 : i32, i32, i32, i32
  }
  func.func @transform_1(%arg0: i32) -> i32 {
    %c0_i32 = arith.constant 0 : i32
    %c0_i32_0 = arith.constant 0 : i32
    return %c0_i32 : i32
  }
  func.func @transform_2(%arg0: i32) -> i32 {
    %c0_i32 = arith.constant 0 : i32
    %c0_i32_0 = arith.constant 0 : i32
    return %c0_i32 : i32
  }
  func.func @transform_3(%arg0: i32) -> (i32, i32, i32, i32) {
    %c0_i32 = arith.constant 0 : i32
    %c0_i32_0 = arith.constant 0 : i32
    %c0_i32_1 = arith.constant 0 : i32
    %c0_i32_2 = arith.constant 0 : i32
    return %arg0, %c0_i32, %c0_i32_0, %c0_i32_1 : i32, i32, i32, i32
  }
}

</mosaic_0001>

<llo_original>
// kernel: tpu_custom_call.1
$region0: #{tpu_custom_call.1}
  #allocation0 [shape = 'u32[]', space=smem, size = 0x4, offset = 0x4, fixed_abs, tag = 'smem constant byte address 0x4 - core index']
  #allocation1 [shape = 'u32[144,128]{1,0:T(1,128)}', space=vmem, size = 0x12000, scoped, tag = 'internal scratch']
  %s0 = inlined_call_operand.hbm [shape: f32[2,3,16,16], index: 0, kind: input, shape index: {}]
  %s1 = inlined_call_operand.vmem [shape: f32[162], index: 1, kind: input, shape index: {}]
  %s2 = inlined_call_operand.vmem [shape: f32[6], index: 2, kind: input, shape index: {}]
  %s3 = inlined_call_operand.vmem [shape: f32[2,6,14,14], index: 3, kind: output, shape index: {}]
  %s4 = sld [smem:[#allocation0]]
  $region57: #{tpu_custom_call.1} parent=0
    _
  %s6 = ssub.s32 1, %s4
  %s7 = scalar_select 0, %s6, %s4
  $region1: #{tpu_custom_call.1} parent=0
    #allocation2 [shape = 'u8[49152]{0}', space=vmem, size = 0xc000, scoped, tag = 'input window, operand 0']
    #allocation3 [shape = 's32[2]{0}', space=sflag, size = 0x8, scoped, tag = 'scoped memory for tpu_custom_call.1']
    #allocation4 [shape = 's32[2]{0}', space=sflag, size = 0x8, scoped, tag = 'scoped memory for tpu_custom_call.1']
    #allocation5 [shape = 'u8[1024]{0}', space=smem, size = 0x400, scoped, tag = 'input window, operand 1, single buffered']
    #allocation6 [shape = 'u8[512]{0}', space=smem, size = 0x200, scoped, tag = 'input window, operand 2, single buffered']
    #allocation7 [shape = 's32[1]{0}', space=sflag, size = 0x4, scoped, tag = 'scoped memory for tpu_custom_call.1']
    %8 = vsyncpa [#allocation3], 0
    %s9 = scalar_lea.sflag [#allocation3], 1
    %10 = vsyncpa %s9, 0
    %11 = vsyncpa [#allocation4], 0
    %12 = vsyncpa [#allocation7], 0
    loop: start=0, step=1, limit=4
    $region2: #{tpu_custom_call.1} parent=1 // loop_pre_header
      _
    $region3: #{tpu_custom_call.1} parent=1 // loop_header
      %s14 = sphi 0, %s18
      %p15 = scmp.ge.s32.totalorder %s14, 4
      %s24 = sphi 0, %s26
      %s27 = sphi 0, %s24
      %s28 = sphi 0, %s27
      %s44 = sphi 0, %s28
      %s48 = sphi 0, %s48
      %s50 = sphi 0, %s48
      %s51 = sphi 0, %s50
      %s65 = sphi 0, %s51
      %s69 = sphi 0, %s69
      %s71 = sphi 0, %s69
      %s72 = sphi 0, %s71
      %s86 = sphi 0, %s72
      %s92 = sphi 0, %s94
      %s95 = sphi 0, %s92
      %s96 = sphi 0, %s95
      %s112 = sphi 0, %s96
    $region4: #{tpu_custom_call.1} parent=1 // loop_header_branch
      %17 = sbr.rel (%p15) target = $region8
    $region5: #{tpu_custom_call.1} parent=1 // loop_body
      %s19 = ssub.s32 %s14, 1
      %s20 = ssub.s32 %s14, 2
      %s21 = sadd.s32 %s14, 1
      %s22 = ssub.s32 %s14, %s21
      %p23 = scmp.eq.s32.totalorder %s22, 0
      %s25 = sadd.s32 %s24, 1
      %s26 = scalar_select %p23, %s24, %s25
      %p29 = pneg %p23
      %p30 = scmp.eq.s32.totalorder %s14, 1
      %p31 = por %p29, %p30
      %p32 = scmp.ne.s32.totalorder %s24, %s27
      %p33 = scmp.eq.s32.totalorder %s14, 0
      %p34 = por %p32, %p33
      %p35 = scmp.ne.s32.totalorder %s24, %s27
      %p36 = scmp.eq.s32.totalorder %s19, 1
      %p37 = por %p35, %p36
      %p38 = scmp.ne.s32.totalorder %s27, %s28
      %p39 = scmp.eq.s32.totalorder %s19, 0
      %p40 = por %p38, %p39
      %p41 = scmp.ne.s32.totalorder %s27, %s28
      %p42 = scmp.eq.s32.totalorder %s20, 1
      %p43 = por %p41, %p42
      %p45 = scmp.ne.s32.totalorder %s28, %s44
      %p46 = scmp.eq.s32.totalorder %s20, 0
      %p47 = por %p45, %p46
      %s49 = sadd.s32 %s48, 1
      %p52 = scmp.eq.s32.totalorder %s14, 1
      %p53 = scmp.ne.s32.totalorder %s48, %s50
      %p54 = scmp.eq.s32.totalorder %s14, 0
      %p55 = por %p53, %p54
      %p56 = scmp.ne.s32.totalorder %s48, %s50
      %p57 = scmp.eq.s32.totalorder %s19, 1
      %p58 = por %p56, %p57
      %p59 = scmp.ne.s32.totalorder %s50, %s51
      %p60 = scmp.eq.s32.totalorder %s19, 0
      %p61 = por %p59, %p60
      %p62 = scmp.ne.s32.totalorder %s50, %s51
      %p63 = scmp.eq.s32.totalorder %s20, 1
      %p64 = por %p62, %p63
      %p66 = scmp.ne.s32.totalorder %s51, %s65
      %p67 = scmp.eq.s32.totalorder %s20, 0
      %p68 = por %p66, %p67
      %s70 = sadd.s32 %s69, 1
      %p73 = scmp.eq.s32.totalorder %s14, 1
      %p74 = scmp.ne.s32.totalorder %s69, %s71
      %p75 = scmp.eq.s32.totalorder %s14, 0
      %p76 = por %p74, %p75
      %p77 = scmp.ne.s32.totalorder %s69, %s71
      %p78 = scmp.eq.s32.totalorder %s19, 1
      %p79 = por %p77, %p78
      %p80 = scmp.ne.s32.totalorder %s71, %s72
      %p81 = scmp.eq.s32.totalorder %s19, 0
      %p82 = por %p80, %p81
      %p83 = scmp.ne.s32.totalorder %s71, %s72
      %p84 = scmp.eq.s32.totalorder %s20, 1
      %p85 = por %p83, %p84
      %p87 = scmp.ne.s32.totalorder %s72, %s86
      %p88 = scmp.eq.s32.totalorder %s20, 0
      %p89 = por %p87, %p88
      %s90 = ssub.s32 %s14, %s21
      %p91 = scmp.eq.s32.totalorder %s90, 0
      %s93 = sadd.s32 %s92, 1
      %s94 = scalar_select %p91, %s92, %s93
      %p97 = pneg %p91
      %p98 = scmp.eq.s32.totalorder %s14, 1
      %p99 = por %p97, %p98
      %p100 = scmp.ne.s32.totalorder %s92, %s95
      %p101 = scmp.eq.s32.totalorder %s14, 0
      %p102 = por %p100, %p101
      %p103 = scmp.ne.s32.totalorder %s92, %s95
      %p104 = scmp.eq.s32.totalorder %s19, 1
      %p105 = por %p103, %p104
      %p106 = scmp.ne.s32.totalorder %s95, %s96
      %p107 = scmp.eq.s32.totalorder %s19, 0
      %p108 = por %p106, %p107
      %p109 = scmp.ne.s32.totalorder %s95, %s96
      %p110 = scmp.eq.s32.totalorder %s20, 1
      %p111 = por %p109, %p110
      %p113 = scmp.ne.s32.totalorder %s96, %s112
      %p114 = scmp.eq.s32.totalorder %s20, 0
      %p115 = por %p113, %p114
      %p116 = scmp.le.s32.totalorder 1, %s14
      %p117 = scmp.lt.s32.totalorder %s14, 3
      %p118 = pnand %p116, %p117
      %p119 = pneg %p118
      // Predicated region
      $region9: #{tpu_custom_call.1} parent=5 // pred_check
        _
      $region10: #{tpu_custom_call.1} parent=5 // pred_check_branch
        %121 = sbr.rel (%p118) target = $region12
      $region11: #{tpu_custom_call.1} parent=5 // pred_region
        %s122 = ssub.s32 %s14, 1
        // Predicated region
        $region13: #{tpu_custom_call.1} parent=11 // pred_check
          %p123 = pneg %p61
        $region14: #{tpu_custom_call.1} parent=11 // pred_check_branch
          %125 = sbr.rel (%p123) target = $region16
        $region15: #{tpu_custom_call.1} parent=11 // pred_region
          %s127 = ssub.s32 32, 32
          %128 = vsyncadd [#allocation4], %s127
          %s130 = sshll.u32 %s1, 4
          %s131 = int_to_ptr.vmem [resolvable:$true] %s130
          %133 = dma.vmem_to_smem %s131, 32, [#allocation5], [#allocation4]
        $region16: #{tpu_custom_call.1} parent=11 // pred_fallthru
          _
        // Predicated region
        $region17: #{tpu_custom_call.1} parent=11 // pred_check
          %p134 = pneg %p82
        $region18: #{tpu_custom_call.1} parent=11 // pred_check_branch
          %136 = sbr.rel (%p134) target = $region20
        $region19: #{tpu_custom_call.1} parent=11 // pred_region
          %s138 = ssub.s32 16, 16
          %139 = vsyncadd [#allocation7], %s138
          %s141 = sshll.u32 %s2, 4
          %s142 = int_to_ptr.vmem [resolvable:$true] %s141
          %144 = dma.vmem_to_smem %s142, 16, [#allocation6], [#allocation7]
        $region20: #{tpu_custom_call.1} parent=11 // pred_fallthru
          _
      $region12: #{tpu_custom_call.1} parent=5 // pred_fallthru
        _
      %p145 = scmp.lt.s32.totalorder %s14, 2
      // Predicated region
      $region21: #{tpu_custom_call.1} parent=5 // pred_check
        %p146 = pneg %p145
      $region22: #{tpu_custom_call.1} parent=5 // pred_check_branch
        %148 = sbr.rel (%p146) target = $region24
      $region23: #{tpu_custom_call.1} parent=5 // pred_region
        // Predicated region
        $region25: #{tpu_custom_call.1} parent=23 // pred_check
          %p149 = pneg %p34
        $region26: #{tpu_custom_call.1} parent=23 // pred_check_branch
          %151 = sbr.rel (%p149) target = $region28
        $region27: #{tpu_custom_call.1} parent=23 // pred_region
          %s152 = sand.u32 %s24, 1
          %s153 = scalar_lea.sflag [#allocation3], %s152
          %s154 = sand.u32 %s24, 1
          %s155 = smul.addr %s154, 48
          %s156 = scalar_lea.vmem [#allocation2], %s155
          %s158 = ssub.s32 768, 768
          %159 = vsyncadd %s153, %s158
          %s160 = smul.addr %s14, 6
          %s161 = smul.addr %s160, 128
          %s162 = scalar_lea.hbm %s0, %s161
          %s163 = sshll.u32 %s156, 4
          %s164 = int_to_ptr.vmem [resolvable:$true] %s163
          %169 = dma.hbm_to_vmem [thread:$0]  %s162, 768, %s164, %s153, 128, 128, 8
        $region28: #{tpu_custom_call.1} parent=23 // pred_fallthru
          _
      $region24: #{tpu_custom_call.1} parent=5 // pred_fallthru
        _
      %p170 = scmp.le.s32.totalorder 1, %s14
      %p171 = scmp.lt.s32.totalorder %s14, 3
      %p172 = pnand %p170, %p171
      %p173 = pneg %p172
      // Predicated region
      $region29: #{tpu_custom_call.1} parent=5 // pred_check
        _
      $region30: #{tpu_custom_call.1} parent=5 // pred_check_branch
        %175 = sbr.rel (%p172) target = $region32
      $region31: #{tpu_custom_call.1} parent=5 // pred_region
        %s176 = ssub.s32 %s14, 1
        %s177 = sand.u32 %s27, 1
        %s178 = scalar_lea.sflag [#allocation3], %s177
        %s179 = sand.u32 %s27, 1
        %s180 = smul.addr %s179, 48
        %s181 = scalar_lea.vmem [#allocation2], %s180
        // Predicated region
        $region33: #{tpu_custom_call.1} parent=31 // pred_check
          %p182 = pneg %p40
        $region34: #{tpu_custom_call.1} parent=31 // pred_check_branch
          %184 = sbr.rel (%p182) target = $region36
        $region35: #{tpu_custom_call.1} parent=31 // pred_region
          %185 = dma.done %s178, 768
        $region36: #{tpu_custom_call.1} parent=31 // pred_fallthru
          _
        // Predicated region
        $region37: #{tpu_custom_call.1} parent=31 // pred_check
          %p186 = pneg %p61
        $region38: #{tpu_custom_call.1} parent=31 // pred_check_branch
          %188 = sbr.rel (%p186) target = $region40
        $region39: #{tpu_custom_call.1} parent=31 // pred_region
          %189 = dma.done [#allocation4], 32
        $region40: #{tpu_custom_call.1} parent=31 // pred_fallthru
          _
        // Predicated region
        $region41: #{tpu_custom_call.1} parent=31 // pred_check
          %p190 = pneg %p82
        $region42: #{tpu_custom_call.1} parent=31 // pred_check_branch
          %192 = sbr.rel (%p190) target = $region44
        $region43: #{tpu_custom_call.1} parent=31 // pred_region
          %193 = dma.done [#allocation7], 16
        $region44: #{tpu_custom_call.1} parent=31 // pred_fallthru
          _
        %194 = sfence
        %s195 = sand.u32 %s27, 1
        %s196 = scalar_lea.sflag [#allocation3], %s195
        %s197 = sand.u32 %s27, 1
        %s198 = smul.addr %s197, 48
        %s199 = scalar_lea.vmem [#allocation2], %s198
        %p200 = pneg %p40
        %p201 = pneg %p37
        %p202 = pneg %p61
        %p203 = pneg %p58
        %p204 = pneg %p82
        %p205 = pneg %p79
        %p206 = pneg %p108
        %p207 = pneg %p105
        %p208 = scmp.lt.s32.totalorder %s19, 1
        %s209 = scalar_select %p208, %s19, 1
        %s210 = smul.addr %s209, 12
        %s211 = smul.addr %s210, 8
        %s212 = scalar_lea.vmem %s3, %s211
        %p213 = scmp.lt.s32.totalorder %s19, 1
        %s214 = scalar_select %p213, %s19, 1
        %s215 = smul.addr %s214, 12
        %s216 = smul.addr %s215, 8
        %s217 = scalar_lea.vmem %s3, %s216
        %v218 = vld [vmem:[%s181] sm:$0xff]
        %v219 = vld [vmem:[%s181 + $0x8] sm:$0x3f]
        %s220 = sld [smem:[#allocation5]]
        %v221 = vstv %s220
        %v222 = vmul.f32 %v218, %v221
        %v223 = vmul.f32 %v219, %v221
        %v224 = vadd.f32 %v222, 0.0
        %v225 = vadd.f32 %v223, 0.0
        %s226 = sld [smem:[#allocation5 + $0x1b]]
        %v227 = vstv %s226
        %v228 = vmul.f32 %v218, %v227
        %v229 = vmul.f32 %v219, %v227
        %v230 = vadd.f32 %v228, 0.0
        %v231 = vadd.f32 %v229, 0.0
        %s232 = sld [smem:[#allocation5 + $0x36]]
        %v233 = vstv %s232
        %v234 = vmul.f32 %v218, %v233
        %v235 = vmul.f32 %v219, %v233
        %v236 = vadd.f32 %v234, 0.0
        %v237 = vadd.f32 %v235, 0.0
        %s238 = sld [smem:[#allocation5 + $0x51]]
        %v239 = vstv %s238
        %v240 = vmul.f32 %v218, %v239
        %v241 = vmul.f32 %v219, %v239
        %v242 = vadd.f32 %v240, 0.0
        %v243 = vadd.f32 %v241, 0.0
        %s244 = sld [smem:[#allocation5 + $0x6c]]
        %v245 = vstv %s244
        %v246 = vmul.f32 %v218, %v245
        %v247 = vmul.f32 %v219, %v245
        %v248 = vadd.f32 %v246, 0.0
        %v249 = vadd.f32 %v247, 0.0
        %s250 = sld [smem:[#allocation5 + $0x87]]
        %v251 = vstv %s250
        %v252 = vmul.f32 %v218, %v251
        %v253 = vmul.f32 %v219, %v251
        %v254 = vadd.f32 %v252, 0.0
        %v255 = vadd.f32 %v253, 0.0
        %s256 = sld [smem:[#allocation5 + $0x1]]
        %v257 = vstv %s256
        %v258 = vmul.f32 %v218, %v257
        %v259 = vmul.f32 %v219, %v257
        %262 = vrot.lane.b32.xlu0 %v258, 127
        %v263 = vpop.permute.xlu0 %262
        %264 = vrot.lane.b32.xlu0 %v259, 127
        %v265 = vpop.permute.xlu0 %264
        %v268 = vadd.f32 %v224, %v263
        %v269 = vadd.f32 %v225, %v265
        %s270 = sld [smem:[#allocation5 + $0x1c]]
        %v271 = vstv %s270
        %v272 = vmul.f32 %v218, %v271
        %v273 = vmul.f32 %v219, %v271
        %276 = vrot.lane.b32.xlu0 %v272, 127
        %v277 = vpop.permute.xlu0 %276
        %278 = vrot.lane.b32.xlu0 %v273, 127
        %v279 = vpop.permute.xlu0 %278
        %v282 = vadd.f32 %v230, %v277
        %v283 = vadd.f32 %v231, %v279
        %s284 = sld [smem:[#allocation5 + $0x37]]
        %v285 = vstv %s284
        %v286 = vmul.f32 %v218, %v285
        %v287 = vmul.f32 %v219, %v285
        %290 = vrot.lane.b32.xlu0 %v286, 127
        %v291 = vpop.permute.xlu0 %290
        %292 = vrot.lane.b32.xlu0 %v287, 127
        %v293 = vpop.permute.xlu0 %292
        %v296 = vadd.f32 %v236, %v291
        %v297 = vadd.f32 %v237, %v293
        %s298 = sld [smem:[#allocation5 + $0x52]]
        %v299 = vstv %s298
        %v300 = vmul.f32 %v218, %v299
        %v301 = vmul.f32 %v219, %v299
        %304 = vrot.lane.b32.xlu0 %v300, 127
        %v305 = vpop.permute.xlu0 %304
        %306 = vrot.lane.b32.xlu0 %v301, 127
        %v307 = vpop.permute.xlu0 %306
        %v310 = vadd.f32 %v242, %v305
        %v311 = vadd.f32 %v243, %v307
        %s312 = sld [smem:[#allocation5 + $0x6d]]
        %v313 = vstv %s312
        %v314 = vmul.f32 %v218, %v313
        %v315 = vmul.f32 %v219, %v313
        %318 = vrot.lane.b32.xlu0 %v314, 127
        %v319 = vpop.permute.xlu0 %318
        %320 = vrot.lane.b32.xlu0 %v315, 127
        %v321 = vpop.permute.xlu0 %320
        %v324 = vadd.f32 %v248, %v319
        %v325 = vadd.f32 %v249, %v321
        %s326 = sld [smem:[#allocation5 + $0x88]]
        %v327 = vstv %s326
        %v328 = vmul.f32 %v218, %v327
        %v329 = vmul.f32 %v219, %v327
        %332 = vrot.lane.b32.xlu0 %v328, 127
        %v333 = vpop.permute.xlu0 %332
        %334 = vrot.lane.b32.xlu0 %v329, 127
        %v335 = vpop.permute.xlu0 %334
        %v338 = vadd.f32 %v254, %v333
        %v339 = vadd.f32 %v255, %v335
        %s340 = sld [smem:[#allocation5 + $0x2]]
        %v341 = vstv %s340
        %v342 = vmul.f32 %v218, %v341
        %v343 = vmul.f32 %v219, %v341
        %346 = vrot.lane.b32.xlu0 %v342, 126
        %v347 = vpop.permute.xlu0 %346
        %348 = vrot.lane.b32.xlu0 %v343, 126
        %v349 = vpop.permute.xlu0 %348
        %v352 = vadd.f32 %v268, %v347
        %v353 = vadd.f32 %v269, %v349
        %s354 = sld [smem:[#allocation5 + $0x1d]]
        %v355 = vstv %s354
        %v356 = vmul.f32 %v218, %v355
        %v357 = vmul.f32 %v219, %v355
        %360 = vrot.lane.b32.xlu0 %v356, 126
        %v361 = vpop.permute.xlu0 %360
        %362 = vrot.lane.b32.xlu0 %v357, 126
        %v363 = vpop.permute.xlu0 %362
        %v366 = vadd.f32 %v282, %v361
        %v367 = vadd.f32 %v283, %v363
        %s368 = sld [smem:[#allocation5 + $0x38]]
        %v369 = vstv %s368
        %v370 = vmul.f32 %v218, %v369
        %v371 = vmul.f32 %v219, %v369
        %374 = vrot.lane.b32.xlu0 %v370, 126
        %v375 = vpop.permute.xlu0 %374
        %376 = vrot.lane.b32.xlu0 %v371, 126
        %v377 = vpop.permute.xlu0 %376
        %v380 = vadd.f32 %v296, %v375
        %v381 = vadd.f32 %v297, %v377
        %s382 = sld [smem:[#allocation5 + $0x53]]
        %v383 = vstv %s382
        %v384 = vmul.f32 %v218, %v383
        %v385 = vmul.f32 %v219, %v383
        %388 = vrot.lane.b32.xlu0 %v384, 126
        %v389 = vpop.permute.xlu0 %388
        %390 = vrot.lane.b32.xlu0 %v385, 126
        %v391 = vpop.permute.xlu0 %390
        %v394 = vadd.f32 %v310, %v389
        %v395 = vadd.f32 %v311, %v391
        %s396 = sld [smem:[#allocation5 + $0x6e]]
        %v397 = vstv %s396
        %v398 = vmul.f32 %v218, %v397
        %v399 = vmul.f32 %v219, %v397
        %402 = vrot.lane.b32.xlu0 %v398, 126
        %v403 = vpop.permute.xlu0 %402
        %404 = vrot.lane.b32.xlu0 %v399, 126
        %v405 = vpop.permute.xlu0 %404
        %v408 = vadd.f32 %v324, %v403
        %v409 = vadd.f32 %v325, %v405
        %s410 = sld [smem:[#allocation5 + $0x89]]
        %v411 = vstv %s410
        %v412 = vmul.f32 %v218, %v411
        %v413 = vmul.f32 %v219, %v411
        %416 = vrot.lane.b32.xlu0 %v412, 126
        %v417 = vpop.permute.xlu0 %416
        %418 = vrot.lane.b32.xlu0 %v413, 126
        %v419 = vpop.permute.xlu0 %418
        %v422 = vadd.f32 %v338, %v417
        %v423 = vadd.f32 %v339, %v419
        %v424 = vld [vmem:[%s181 + $0x1] sm:$0xff]
        %v425 = vld [vmem:[%s181 + $0x9] sm:$0x3f]
        %s426 = sld [smem:[#allocation5 + $0x3]]
        %v427 = vstv %s426
        %v428 = vmul.f32 %v424, %v427
        %v429 = vmul.f32 %v425, %v427
        %v430 = vadd.f32 %v352, %v428
        %v431 = vadd.f32 %v353, %v429
        %s432 = sld [smem:[#allocation5 + $0x1e]]
        %v433 = vstv %s432
        %v434 = vmul.f32 %v424, %v433
        %v435 = vmul.f32 %v425, %v433
        %v436 = vadd.f32 %v366, %v434
        %v437 = vadd.f32 %v367, %v435
        %s438 = sld [smem:[#allocation5 + $0x39]]
        %v439 = vstv %s438
        %v440 = vmul.f32 %v424, %v439
        %v441 = vmul.f32 %v425, %v439
        %v442 = vadd.f32 %v380, %v440
        %v443 = vadd.f32 %v381, %v441
        %s444 = sld [smem:[#allocation5 + $0x54]]
        %v445 = vstv %s444
        %v446 = vmul.f32 %v424, %v445
        %v447 = vmul.f32 %v425, %v445
        %v448 = vadd.f32 %v394, %v446
        %v449 = vadd.f32 %v395, %v447
        %s450 = sld [smem:[#allocation5 + $0x6f]]
        %v451 = vstv %s450
        %v452 = vmul.f32 %v424, %v451
        %v453 = vmul.f32 %v425, %v451
        %v454 = vadd.f32 %v408, %v452
        %v455 = vadd.f32 %v409, %v453
        %s456 = sld [smem:[#allocation5 + $0x8a]]
        %v457 = vstv %s456
        %v458 = vmul.f32 %v424, %v457
        %v459 = vmul.f32 %v425, %v457
        %v460 = vadd.f32 %v422, %v458
        %v461 = vadd.f32 %v423, %v459
        %s462 = sld [smem:[#allocation5 + $0x4]]
        %v463 = vstv %s462
        %v464 = vmul.f32 %v424, %v463
        %v465 = vmul.f32 %v425, %v463
        %468 = vrot.lane.b32.xlu0 %v464, 127
        %v469 = vpop.permute.xlu0 %468
        %470 = vrot.lane.b32.xlu0 %v465, 127
        %v471 = vpop.permute.xlu0 %470
        %v474 = vadd.f32 %v430, %v469
        %v475 = vadd.f32 %v431, %v471
        %s476 = sld [smem:[#allocation5 + $0x1f]]
        %v477 = vstv %s476
        %v478 = vmul.f32 %v424, %v477
        %v479 = vmul.f32 %v425, %v477
        %482 = vrot.lane.b32.xlu0 %v478, 127
        %v483 = vpop.permute.xlu0 %482
        %484 = vrot.lane.b32.xlu0 %v479, 127
        %v485 = vpop.permute.xlu0 %484
        %v488 = vadd.f32 %v436, %v483
        %v489 = vadd.f32 %v437, %v485
        %s490 = sld [smem:[#allocation5 + $0x3a]]
        %v491 = vstv %s490
        %v492 = vmul.f32 %v424, %v491
        %v493 = vmul.f32 %v425, %v491
        %496 = vrot.lane.b32.xlu0 %v492, 127
        %v497 = vpop.permute.xlu0 %496
        %498 = vrot.lane.b32.xlu0 %v493, 127
        %v499 = vpop.permute.xlu0 %498
        %v502 = vadd.f32 %v442, %v497
        %v503 = vadd.f32 %v443, %v499
        %s504 = sld [smem:[#allocation5 + $0x55]]
        %v505 = vstv %s504
        %v506 = vmul.f32 %v424, %v505
        %v507 = vmul.f32 %v425, %v505
        %510 = vrot.lane.b32.xlu0 %v506, 127
        %v511 = vpop.permute.xlu0 %510
        %512 = vrot.lane.b32.xlu0 %v507, 127
        %v513 = vpop.permute.xlu0 %512
        %v516 = vadd.f32 %v448, %v511
        %v517 = vadd.f32 %v449, %v513
        %s518 = sld [smem:[#allocation5 + $0x70]]
        %v519 = vstv %s518
        %v520 = vmul.f32 %v424, %v519
        %v521 = vmul.f32 %v425, %v519
        %524 = vrot.lane.b32.xlu0 %v520, 127
        %v525 = vpop.permute.xlu0 %524
        %526 = vrot.lane.b32.xlu0 %v521, 127
        %v527 = vpop.permute.xlu0 %526
        %v530 = vadd.f32 %v454, %v525
        %v531 = vadd.f32 %v455, %v527
        %s532 = sld [smem:[#allocation5 + $0x8b]]
        %v533 = vstv %s532
        %v534 = vmul.f32 %v424, %v533
        %v535 = vmul.f32 %v425, %v533
        %538 = vrot.lane.b32.xlu0 %v534, 127
        %v539 = vpop.permute.xlu0 %538
        %540 = vrot.lane.b32.xlu0 %v535, 127
        %v541 = vpop.permute.xlu0 %540
        %v544 = vadd.f32 %v460, %v539
        %v545 = vadd.f32 %v461, %v541
        %s546 = sld [smem:[#allocation5 + $0x5]]
        %v547 = vstv %s546
        %v548 = vmul.f32 %v424, %v547
        %v549 = vmul.f32 %v425, %v547
        %552 = vrot.lane.b32.xlu0 %v548, 126
        %v553 = vpop.permute.xlu0 %552
        %554 = vrot.lane.b32.xlu0 %v549, 126
        %v555 = vpop.permute.xlu0 %554
        %v558 = vadd.f32 %v474, %v553
        %v559 = vadd.f32 %v475, %v555
        %s560 = sld [smem:[#allocation5 + $0x20]]
        %v561 = vstv %s560
        %v562 = vmul.f32 %v424, %v561
        %v563 = vmul.f32 %v425, %v561
        %566 = vrot.lane.b32.xlu0 %v562, 126
        %v567 = vpop.permute.xlu0 %566
        %568 = vrot.lane.b32.xlu0 %v563, 126
        %v569 = vpop.permute.xlu0 %568
        %v572 = vadd.f32 %v488, %v567
        %v573 = vadd.f32 %v489, %v569
        %s574 = sld [smem:[#allocation5 + $0x3b]]
        %v575 = vstv %s574
        %v576 = vmul.f32 %v424, %v575
        %v577 = vmul.f32 %v425, %v575
        %580 = vrot.lane.b32.xlu0 %v576, 126
        %v581 = vpop.permute.xlu0 %580
        %582 = vrot.lane.b32.xlu0 %v577, 126
        %v583 = vpop.permute.xlu0 %582
        %v586 = vadd.f32 %v502, %v581
        %v587 = vadd.f32 %v503, %v583
        %s588 = sld [smem:[#allocation5 + $0x56]]
        %v589 = vstv %s588
        %v590 = vmul.f32 %v424, %v589
        %v591 = vmul.f32 %v425, %v589
        %594 = vrot.lane.b32.xlu0 %v590, 126
        %v595 = vpop.permute.xlu0 %594
        %596 = vrot.lane.b32.xlu0 %v591, 126
        %v597 = vpop.permute.xlu0 %596
        %v600 = vadd.f32 %v516, %v595
        %v601 = vadd.f32 %v517, %v597
        %s602 = sld [smem:[#allocation5 + $0x71]]
        %v603 = vstv %s602
        %v604 = vmul.f32 %v424, %v603
        %v605 = vmul.f32 %v425, %v603
        %608 = vrot.lane.b32.xlu0 %v604, 126
        %v609 = vpop.permute.xlu0 %608
        %610 = vrot.lane.b32.xlu0 %v605, 126
        %v611 = vpop.permute.xlu0 %610
        %v614 = vadd.f32 %v530, %v609
        %v615 = vadd.f32 %v531, %v611
        %s616 = sld [smem:[#allocation5 + $0x8c]]
        %v617 = vstv %s616
        %v618 = vmul.f32 %v424, %v617
        %v619 = vmul.f32 %v425, %v617
        %622 = vrot.lane.b32.xlu0 %v618, 126
        %v623 = vpop.permute.xlu0 %622
        %624 = vrot.lane.b32.xlu0 %v619, 126
        %v625 = vpop.permute.xlu0 %624
        %v628 = vadd.f32 %v544, %v623
        %v629 = vadd.f32 %v545, %v625
        %v630 = vld [vmem:[%s181 + $0x2] sm:$0xff]
        %v631 = vld [vmem:[%s181 + $0xa] sm:$0x3f]
        %s632 = sld [smem:[#allocation5 + $0x6]]
        %v633 = vstv %s632
        %v634 = vmul.f32 %v630, %v633
        %v635 = vmul.f32 %v631, %v633
        %v636 = vadd.f32 %v558, %v634
        %v637 = vadd.f32 %v559, %v635
        %s638 = sld [smem:[#allocation5 + $0x21]]
        %v639 = vstv %s638
        %v640 = vmul.f32 %v630, %v639
        %v641 = vmul.f32 %v631, %v639
        %v642 = vadd.f32 %v572, %v640
        %v643 = vadd.f32 %v573, %v641
        %s644 = sld [smem:[#allocation5 + $0x3c]]
        %v645 = vstv %s644
        %v646 = vmul.f32 %v630, %v645
        %v647 = vmul.f32 %v631, %v645
        %v648 = vadd.f32 %v586, %v646
        %v649 = vadd.f32 %v587, %v647
        %s650 = sld [smem:[#allocation5 + $0x57]]
        %v651 = vstv %s650
        %v652 = vmul.f32 %v630, %v651
        %v653 = vmul.f32 %v631, %v651
        %v654 = vadd.f32 %v600, %v652
        %v655 = vadd.f32 %v601, %v653
        %s656 = sld [smem:[#allocation5 + $0x72]]
        %v657 = vstv %s656
        %v658 = vmul.f32 %v630, %v657
        %v659 = vmul.f32 %v631, %v657
        %v660 = vadd.f32 %v614, %v658
        %v661 = vadd.f32 %v615, %v659
        %s662 = sld [smem:[#allocation5 + $0x8d]]
        %v663 = vstv %s662
        %v664 = vmul.f32 %v630, %v663
        %v665 = vmul.f32 %v631, %v663
        %v666 = vadd.f32 %v628, %v664
        %v667 = vadd.f32 %v629, %v665
        %s668 = sld [smem:[#allocation5 + $0x7]]
        %v669 = vstv %s668
        %v670 = vmul.f32 %v630, %v669
        %v671 = vmul.f32 %v631, %v669
        %674 = vrot.lane.b32.xlu0 %v670, 127
        %v675 = vpop.permute.xlu0 %674
        %676 = vrot.lane.b32.xlu0 %v671, 127
        %v677 = vpop.permute.xlu0 %676
        %v680 = vadd.f32 %v636, %v675
        %v681 = vadd.f32 %v637, %v677
        %s682 = sld [smem:[#allocation5 + $0x22]]
        %v683 = vstv %s682
        %v684 = vmul.f32 %v630, %v683
        %v685 = vmul.f32 %v631, %v683
        %688 = vrot.lane.b32.xlu0 %v684, 127
        %v689 = vpop.permute.xlu0 %688
        %690 = vrot.lane.b32.xlu0 %v685, 127
        %v691 = vpop.permute.xlu0 %690
        %v694 = vadd.f32 %v642, %v689
        %v695 = vadd.f32 %v643, %v691
        %s696 = sld [smem:[#allocation5 + $0x3d]]
        %v697 = vstv %s696
        %v698 = vmul.f32 %v630, %v697
        %v699 = vmul.f32 %v631, %v697
        %702 = vrot.lane.b32.xlu0 %v698, 127
        %v703 = vpop.permute.xlu0 %702
        %704 = vrot.lane.b32.xlu0 %v699, 127
        %v705 = vpop.permute.xlu0 %704
        %v708 = vadd.f32 %v648, %v703
        %v709 = vadd.f32 %v649, %v705
        %s710 = sld [smem:[#allocation5 + $0x58]]
        %v711 = vstv %s710
        %v712 = vmul.f32 %v630, %v711
        %v713 = vmul.f32 %v631, %v711
        %716 = vrot.lane.b32.xlu0 %v712, 127
        %v717 = vpop.permute.xlu0 %716
        %718 = vrot.lane.b32.xlu0 %v713, 127
        %v719 = vpop.permute.xlu0 %718
        %v722 = vadd.f32 %v654, %v717
        %v723 = vadd.f32 %v655, %v719
        %s724 = sld [smem:[#allocation5 + $0x73]]
        %v725 = vstv %s724
        %v726 = vmul.f32 %v630, %v725
        %v727 = vmul.f32 %v631, %v725
        %730 = vrot.lane.b32.xlu0 %v726, 127
        %v731 = vpop.permute.xlu0 %730
        %732 = vrot.lane.b32.xlu0 %v727, 127
        %v733 = vpop.permute.xlu0 %732
        %v736 = vadd.f32 %v660, %v731
        %v737 = vadd.f32 %v661, %v733
        %s738 = sld [smem:[#allocation5 + $0x8e]]
        %v739 = vstv %s738
        %v740 = vmul.f32 %v630, %v739
        %v741 = vmul.f32 %v631, %v739
        %744 = vrot.lane.b32.xlu0 %v740, 127
        %v745 = vpop.permute.xlu0 %744
        %746 = vrot.lane.b32.xlu0 %v741, 127
        %v747 = vpop.permute.xlu0 %746
        %v750 = vadd.f32 %v666, %v745
        %v751 = vadd.f32 %v667, %v747
        %s752 = sld [smem:[#allocation5 + $0x8]]
        %v753 = vstv %s752
        %v754 = vmul.f32 %v630, %v753
        %v755 = vmul.f32 %v631, %v753
        %758 = vrot.lane.b32.xlu0 %v754, 126
        %v759 = vpop.permute.xlu0 %758
        %760 = vrot.lane.b32.xlu0 %v755, 126
        %v761 = vpop.permute.xlu0 %760
        %v764 = vadd.f32 %v680, %v759
        %v765 = vadd.f32 %v681, %v761
        %s766 = sld [smem:[#allocation5 + $0x23]]
        %v767 = vstv %s766
        %v768 = vmul.f32 %v630, %v767
        %v769 = vmul.f32 %v631, %v767
        %772 = vrot.lane.b32.xlu0 %v768, 126
        %v773 = vpop.permute.xlu0 %772
        %774 = vrot.lane.b32.xlu0 %v769, 126
        %v775 = vpop.permute.xlu0 %774
        %v778 = vadd.f32 %v694, %v773
        %v779 = vadd.f32 %v695, %v775
        %s780 = sld [smem:[#allocation5 + $0x3e]]
        %v781 = vstv %s780
        %v782 = vmul.f32 %v630, %v781
        %v783 = vmul.f32 %v631, %v781
        %786 = vrot.lane.b32.xlu0 %v782, 126
        %v787 = vpop.permute.xlu0 %786
        %788 = vrot.lane.b32.xlu0 %v783, 126
        %v789 = vpop.permute.xlu0 %788
        %v792 = vadd.f32 %v708, %v787
        %v793 = vadd.f32 %v709, %v789
        %s794 = sld [smem:[#allocation5 + $0x59]]
        %v795 = vstv %s794
        %v796 = vmul.f32 %v630, %v795
        %v797 = vmul.f32 %v631, %v795
        %800 = vrot.lane.b32.xlu0 %v796, 126
        %v801 = vpop.permute.xlu0 %800
        %802 = vrot.lane.b32.xlu0 %v797, 126
        %v803 = vpop.permute.xlu0 %802
        %v806 = vadd.f32 %v722, %v801
        %v807 = vadd.f32 %v723, %v803
        %s808 = sld [smem:[#allocation5 + $0x74]]
        %v809 = vstv %s808
        %v810 = vmul.f32 %v630, %v809
        %v811 = vmul.f32 %v631, %v809
        %814 = vrot.lane.b32.xlu0 %v810, 126
        %v815 = vpop.permute.xlu0 %814
        %816 = vrot.lane.b32.xlu0 %v811, 126
        %v817 = vpop.permute.xlu0 %816
        %v820 = vadd.f32 %v736, %v815
        %v821 = vadd.f32 %v737, %v817
        %s822 = sld [smem:[#allocation5 + $0x8f]]
        %v823 = vstv %s822
        %v824 = vmul.f32 %v630, %v823
        %v825 = vmul.f32 %v631, %v823
        %828 = vrot.lane.b32.xlu0 %v824, 126
        %v829 = vpop.permute.xlu0 %828
        %830 = vrot.lane.b32.xlu0 %v825, 126
        %v831 = vpop.permute.xlu0 %830
        %v834 = vadd.f32 %v750, %v829
        %v835 = vadd.f32 %v751, %v831
        %s836 = scalar_lea.vmem %s181, 16 [#allocation2]
        %v837 = vld [vmem:[%s836] sm:$0xff]
        %v838 = vld [vmem:[%s836 + $0x8] sm:$0x3f]
        %s839 = sld [smem:[#allocation5 + $0x9]]
        %v840 = vstv %s839
        %v841 = vmul.f32 %v837, %v840
        %v842 = vmul.f32 %v838, %v840
        %v843 = vadd.f32 %v764, %v841
        %v844 = vadd.f32 %v765, %v842
        %s845 = sld [smem:[#allocation5 + $0x24]]
        %v846 = vstv %s845
        %v847 = vmul.f32 %v837, %v846
        %v848 = vmul.f32 %v838, %v846
        %v849 = vadd.f32 %v778, %v847
        %v850 = vadd.f32 %v779, %v848
        %s851 = sld [smem:[#allocation5 + $0x3f]]
        %v852 = vstv %s851
        %v853 = vmul.f32 %v837, %v852
        %v854 = vmul.f32 %v838, %v852
        %v855 = vadd.f32 %v792, %v853
        %v856 = vadd.f32 %v793, %v854
        %s857 = sld [smem:[#allocation5 + $0x5a]]
        %v858 = vstv %s857
        %v859 = vmul.f32 %v837, %v858
        %v860 = vmul.f32 %v838, %v858
        %v861 = vadd.f32 %v806, %v859
        %v862 = vadd.f32 %v807, %v860
        %s863 = sld [smem:[#allocation5 + $0x75]]
        %v864 = vstv %s863
        %v865 = vmul.f32 %v837, %v864
        %v866 = vmul.f32 %v838, %v864
        %v867 = vadd.f32 %v820, %v865
        %v868 = vadd.f32 %v821, %v866
        %s869 = sld [smem:[#allocation5 + $0x90]]
        %v870 = vstv %s869
        %v871 = vmul.f32 %v837, %v870
        %v872 = vmul.f32 %v838, %v870
        %v873 = vadd.f32 %v834, %v871
        %v874 = vadd.f32 %v835, %v872
        %s875 = sld [smem:[#allocation5 + $0xa]]
        %v876 = vstv %s875
        %v877 = vmul.f32 %v837, %v876
        %v878 = vmul.f32 %v838, %v876
        %881 = vrot.lane.b32.xlu0 %v877, 127
        %v882 = vpop.permute.xlu0 %881
        %883 = vrot.lane.b32.xlu0 %v878, 127
        %v884 = vpop.permute.xlu0 %883
        %v887 = vadd.f32 %v843, %v882
        %v888 = vadd.f32 %v844, %v884
        %s889 = sld [smem:[#allocation5 + $0x25]]
        %v890 = vstv %s889
        %v891 = vmul.f32 %v837, %v890
        %v892 = vmul.f32 %v838, %v890
        %895 = vrot.lane.b32.xlu0 %v891, 127
        %v896 = vpop.permute.xlu0 %895
        %897 = vrot.lane.b32.xlu0 %v892, 127
        %v898 = vpop.permute.xlu0 %897
        %v901 = vadd.f32 %v849, %v896
        %v902 = vadd.f32 %v850, %v898
        %s903 = sld [smem:[#allocation5 + $0x40]]
        %v904 = vstv %s903
        %v905 = vmul.f32 %v837, %v904
        %v906 = vmul.f32 %v838, %v904
        %909 = vrot.lane.b32.xlu0 %v905, 127
        %v910 = vpop.permute.xlu0 %909
        %911 = vrot.lane.b32.xlu0 %v906, 127
        %v912 = vpop.permute.xlu0 %911
        %v915 = vadd.f32 %v855, %v910
        %v916 = vadd.f32 %v856, %v912
        %s917 = sld [smem:[#allocation5 + $0x5b]]
        %v918 = vstv %s917
        %v919 = vmul.f32 %v837, %v918
        %v920 = vmul.f32 %v838, %v918
        %923 = vrot.lane.b32.xlu0 %v919, 127
        %v924 = vpop.permute.xlu0 %923
        %925 = vrot.lane.b32.xlu0 %v920, 127
        %v926 = vpop.permute.xlu0 %925
        %v929 = vadd.f32 %v861, %v924
        %v930 = vadd.f32 %v862, %v926
        %s931 = sld [smem:[#allocation5 + $0x76]]
        %v932 = vstv %s931
        %v933 = vmul.f32 %v837, %v932
        %v934 = vmul.f32 %v838, %v932
        %937 = vrot.lane.b32.xlu0 %v933, 127
        %v938 = vpop.permute.xlu0 %937
        %939 = vrot.lane.b32.xlu0 %v934, 127
        %v940 = vpop.permute.xlu0 %939
        %v943 = vadd.f32 %v867, %v938
        %v944 = vadd.f32 %v868, %v940
        %s945 = sld [smem:[#allocation5 + $0x91]]
        %v946 = vstv %s945
        %v947 = vmul.f32 %v837, %v946
        %v948 = vmul.f32 %v838, %v946
        %951 = vrot.lane.b32.xlu0 %v947, 127
        %v952 = vpop.permute.xlu0 %951
        %953 = vrot.lane.b32.xlu0 %v948, 127
        %v954 = vpop.permute.xlu0 %953
        %v957 = vadd.f32 %v873, %v952
        %v958 = vadd.f32 %v874, %v954
        %s959 = sld [smem:[#allocation5 + $0xb]]
        %v960 = vstv %s959
        %v961 = vmul.f32 %v837, %v960
        %v962 = vmul.f32 %v838, %v960
        %965 = vrot.lane.b32.xlu0 %v961, 126
        %v966 = vpop.permute.xlu0 %965
        %967 = vrot.lane.b32.xlu0 %v962, 126
        %v968 = vpop.permute.xlu0 %967
        %v971 = vadd.f32 %v887, %v966
        %v972 = vadd.f32 %v888, %v968
        %s973 = sld [smem:[#allocation5 + $0x26]]
        %v974 = vstv %s973
        %v975 = vmul.f32 %v837, %v974
        %v976 = vmul.f32 %v838, %v974
        %979 = vrot.lane.b32.xlu0 %v975, 126
        %v980 = vpop.permute.xlu0 %979
        %981 = vrot.lane.b32.xlu0 %v976, 126
        %v982 = vpop.permute.xlu0 %981
        %v985 = vadd.f32 %v901, %v980
        %v986 = vadd.f32 %v902, %v982
        %s987 = sld [smem:[#allocation5 + $0x41]]
        %v988 = vstv %s987
        %v989 = vmul.f32 %v837, %v988
        %v990 = vmul.f32 %v838, %v988
        %993 = vrot.lane.b32.xlu0 %v989, 126
        %v994 = vpop.permute.xlu0 %993
        %995 = vrot.lane.b32.xlu0 %v990, 126
        %v996 = vpop.permute.xlu0 %995
        %v999 = vadd.f32 %v915, %v994
        %v1000 = vadd.f32 %v916, %v996
        %s1001 = sld [smem:[#allocation5 + $0x5c]]
        %v1002 = vstv %s1001
        %v1003 = vmul.f32 %v837, %v1002
        %v1004 = vmul.f32 %v838, %v1002
        %1007 = vrot.lane.b32.xlu0 %v1003, 126
        %v1008 = vpop.permute.xlu0 %1007
        %1009 = vrot.lane.b32.xlu0 %v1004, 126
        %v1010 = vpop.permute.xlu0 %1009
        %v1013 = vadd.f32 %v929, %v1008
        %v1014 = vadd.f32 %v930, %v1010
        %s1015 = sld [smem:[#allocation5 + $0x77]]
        %v1016 = vstv %s1015
        %v1017 = vmul.f32 %v837, %v1016
        %v1018 = vmul.f32 %v838, %v1016
        %1021 = vrot.lane.b32.xlu0 %v1017, 126
        %v1022 = vpop.permute.xlu0 %1021
        %1023 = vrot.lane.b32.xlu0 %v1018, 126
        %v1024 = vpop.permute.xlu0 %1023
        %v1027 = vadd.f32 %v943, %v1022
        %v1028 = vadd.f32 %v944, %v1024
        %s1029 = sld [smem:[#allocation5 + $0x92]]
        %v1030 = vstv %s1029
        %v1031 = vmul.f32 %v837, %v1030
        %v1032 = vmul.f32 %v838, %v1030
        %1035 = vrot.lane.b32.xlu0 %v1031, 126
        %v1036 = vpop.permute.xlu0 %1035
        %1037 = vrot.lane.b32.xlu0 %v1032, 126
        %v1038 = vpop.permute.xlu0 %1037
        %v1041 = vadd.f32 %v957, %v1036
        %v1042 = vadd.f32 %v958, %v1038
        %v1043 = vld [vmem:[%s836 + $0x1] sm:$0xff]
        %v1044 = vld [vmem:[%s836 + $0x9] sm:$0x3f]
        %s1045 = sld [smem:[#allocation5 + $0xc]]
        %v1046 = vstv %s1045
        %v1047 = vmul.f32 %v1043, %v1046
        %v1048 = vmul.f32 %v1044, %v1046
        %v1049 = vadd.f32 %v971, %v1047
        %v1050 = vadd.f32 %v972, %v1048
        %s1051 = sld [smem:[#allocation5 + $0x27]]
        %v1052 = vstv %s1051
        %v1053 = vmul.f32 %v1043, %v1052
        %v1054 = vmul.f32 %v1044, %v1052
        %v1055 = vadd.f32 %v985, %v1053
        %v1056 = vadd.f32 %v986, %v1054
        %s1057 = sld [smem:[#allocation5 + $0x42]]
        %v1058 = vstv %s1057
        %v1059 = vmul.f32 %v1043, %v1058
        %v1060 = vmul.f32 %v1044, %v1058
        %v1061 = vadd.f32 %v999, %v1059
        %v1062 = vadd.f32 %v1000, %v1060
        %s1063 = sld [smem:[#allocation5 + $0x5d]]
        %v1064 = vstv %s1063
        %v1065 = vmul.f32 %v1043, %v1064
        %v1066 = vmul.f32 %v1044, %v1064
        %v1067 = vadd.f32 %v1013, %v1065
        %v1068 = vadd.f32 %v1014, %v1066
        %s1069 = sld [smem:[#allocation5 + $0x78]]
        %v1070 = vstv %s1069
        %v1071 = vmul.f32 %v1043, %v1070
        %v1072 = vmul.f32 %v1044, %v1070
        %v1073 = vadd.f32 %v1027, %v1071
        %v1074 = vadd.f32 %v1028, %v1072
        %s1075 = sld [smem:[#allocation5 + $0x93]]
        %v1076 = vstv %s1075
        %v1077 = vmul.f32 %v1043, %v1076
        %v1078 = vmul.f32 %v1044, %v1076
        %v1079 = vadd.f32 %v1041, %v1077
        %v1080 = vadd.f32 %v1042, %v1078
        %s1081 = sld [smem:[#allocation5 + $0xd]]
        %v1082 = vstv %s1081
        %v1083 = vmul.f32 %v1043, %v1082
        %v1084 = vmul.f32 %v1044, %v1082
        %1087 = vrot.lane.b32.xlu0 %v1083, 127
        %v1088 = vpop.permute.xlu0 %1087
        %1089 = vrot.lane.b32.xlu0 %v1084, 127
        %v1090 = vpop.permute.xlu0 %1089
        %v1093 = vadd.f32 %v1049, %v1088
        %v1094 = vadd.f32 %v1050, %v1090
        %s1095 = sld [smem:[#allocation5 + $0x28]]
        %v1096 = vstv %s1095
        %v1097 = vmul.f32 %v1043, %v1096
        %v1098 = vmul.f32 %v1044, %v1096
        %1101 = vrot.lane.b32.xlu0 %v1097, 127
        %v1102 = vpop.permute.xlu0 %1101
        %1103 = vrot.lane.b32.xlu0 %v1098, 127
        %v1104 = vpop.permute.xlu0 %1103
        %v1107 = vadd.f32 %v1055, %v1102
        %v1108 = vadd.f32 %v1056, %v1104
        %s1109 = sld [smem:[#allocation5 + $0x43]]
        %v1110 = vstv %s1109
        %v1111 = vmul.f32 %v1043, %v1110
        %v1112 = vmul.f32 %v1044, %v1110
        %1115 = vrot.lane.b32.xlu0 %v1111, 127
        %v1116 = vpop.permute.xlu0 %1115
        %1117 = vrot.lane.b32.xlu0 %v1112, 127
        %v1118 = vpop.permute.xlu0 %1117
        %v1121 = vadd.f32 %v1061, %v1116
        %v1122 = vadd.f32 %v1062, %v1118
        %s1123 = sld [smem:[#allocation5 + $0x5e]]
        %v1124 = vstv %s1123
        %v1125 = vmul.f32 %v1043, %v1124
        %v1126 = vmul.f32 %v1044, %v1124
        %1129 = vrot.lane.b32.xlu0 %v1125, 127
        %v1130 = vpop.permute.xlu0 %1129
        %1131 = vrot.lane.b32.xlu0 %v1126, 127
        %v1132 = vpop.permute.xlu0 %1131
        %v1135 = vadd.f32 %v1067, %v1130
        %v1136 = vadd.f32 %v1068, %v1132
        %s1137 = sld [smem:[#allocation5 + $0x79]]
        %v1138 = vstv %s1137
        %v1139 = vmul.f32 %v1043, %v1138
        %v1140 = vmul.f32 %v1044, %v1138
        %1143 = vrot.lane.b32.xlu0 %v1139, 127
        %v1144 = vpop.permute.xlu0 %1143
        %1145 = vrot.lane.b32.xlu0 %v1140, 127
        %v1146 = vpop.permute.xlu0 %1145
        %v1149 = vadd.f32 %v1073, %v1144
        %v1150 = vadd.f32 %v1074, %v1146
        %s1151 = sld [smem:[#allocation5 + $0x94]]
        %v1152 = vstv %s1151
        %v1153 = vmul.f32 %v1043, %v1152
        %v1154 = vmul.f32 %v1044, %v1152
        %1157 = vrot.lane.b32.xlu0 %v1153, 127
        %v1158 = vpop.permute.xlu0 %1157
        %1159 = vrot.lane.b32.xlu0 %v1154, 127
        %v1160 = vpop.permute.xlu0 %1159
        %v1163 = vadd.f32 %v1079, %v1158
        %v1164 = vadd.f32 %v1080, %v1160
        %s1165 = sld [smem:[#allocation5 + $0xe]]
        %v1166 = vstv %s1165
        %v1167 = vmul.f32 %v1043, %v1166
        %v1168 = vmul.f32 %v1044, %v1166
        %1171 = vrot.lane.b32.xlu0 %v1167, 126
        %v1172 = vpop.permute.xlu0 %1171
        %1173 = vrot.lane.b32.xlu0 %v1168, 126
        %v1174 = vpop.permute.xlu0 %1173
        %v1177 = vadd.f32 %v1093, %v1172
        %v1178 = vadd.f32 %v1094, %v1174
        %s1179 = sld [smem:[#allocation5 + $0x29]]
        %v1180 = vstv %s1179
        %v1181 = vmul.f32 %v1043, %v1180
        %v1182 = vmul.f32 %v1044, %v1180
        %1185 = vrot.lane.b32.xlu0 %v1181, 126
        %v1186 = vpop.permute.xlu0 %1185
        %1187 = vrot.lane.b32.xlu0 %v1182, 126
        %v1188 = vpop.permute.xlu0 %1187
        %v1191 = vadd.f32 %v1107, %v1186
        %v1192 = vadd.f32 %v1108, %v1188
        %s1193 = sld [smem:[#allocation5 + $0x44]]
        %v1194 = vstv %s1193
        %v1195 = vmul.f32 %v1043, %v1194
        %v1196 = vmul.f32 %v1044, %v1194
        %1199 = vrot.lane.b32.xlu0 %v1195, 126
        %v1200 = vpop.permute.xlu0 %1199
        %1201 = vrot.lane.b32.xlu0 %v1196, 126
        %v1202 = vpop.permute.xlu0 %1201
        %v1205 = vadd.f32 %v1121, %v1200
        %v1206 = vadd.f32 %v1122, %v1202
        %s1207 = sld [smem:[#allocation5 + $0x5f]]
        %v1208 = vstv %s1207
        %v1209 = vmul.f32 %v1043, %v1208
        %v1210 = vmul.f32 %v1044, %v1208
        %1213 = vrot.lane.b32.xlu0 %v1209, 126
        %v1214 = vpop.permute.xlu0 %1213
        %1215 = vrot.lane.b32.xlu0 %v1210, 126
        %v1216 = vpop.permute.xlu0 %1215
        %v1219 = vadd.f32 %v1135, %v1214
        %v1220 = vadd.f32 %v1136, %v1216
        %s1221 = sld [smem:[#allocation5 + $0x7a]]
        %v1222 = vstv %s1221
        %v1223 = vmul.f32 %v1043, %v1222
        %v1224 = vmul.f32 %v1044, %v1222
        %1227 = vrot.lane.b32.xlu0 %v1223, 126
        %v1228 = vpop.permute.xlu0 %1227
        %1229 = vrot.lane.b32.xlu0 %v1224, 126
        %v1230 = vpop.permute.xlu0 %1229
        %v1233 = vadd.f32 %v1149, %v1228
        %v1234 = vadd.f32 %v1150, %v1230
        %s1235 = sld [smem:[#allocation5 + $0x95]]
        %v1236 = vstv %s1235
        %v1237 = vmul.f32 %v1043, %v1236
        %v1238 = vmul.f32 %v1044, %v1236
        %1241 = vrot.lane.b32.xlu0 %v1237, 126
        %v1242 = vpop.permute.xlu0 %1241
        %1243 = vrot.lane.b32.xlu0 %v1238, 126
        %v1244 = vpop.permute.xlu0 %1243
        %v1247 = vadd.f32 %v1163, %v1242
        %v1248 = vadd.f32 %v1164, %v1244
        %v1249 = vld [vmem:[%s836 + $0x2] sm:$0xff]
        %v1250 = vld [vmem:[%s836 + $0xa] sm:$0x3f]
        %s1251 = sld [smem:[#allocation5 + $0xf]]
        %v1252 = vstv %s1251
        %v1253 = vmul.f32 %v1249, %v1252
        %v1254 = vmul.f32 %v1250, %v1252
        %v1255 = vadd.f32 %v1177, %v1253
        %v1256 = vadd.f32 %v1178, %v1254
        %s1257 = sld [smem:[#allocation5 + $0x2a]]
        %v1258 = vstv %s1257
        %v1259 = vmul.f32 %v1249, %v1258
        %v1260 = vmul.f32 %v1250, %v1258
        %v1261 = vadd.f32 %v1191, %v1259
        %v1262 = vadd.f32 %v1192, %v1260
        %s1263 = sld [smem:[#allocation5 + $0x45]]
        %v1264 = vstv %s1263
        %v1265 = vmul.f32 %v1249, %v1264
        %v1266 = vmul.f32 %v1250, %v1264
        %v1267 = vadd.f32 %v1205, %v1265
        %v1268 = vadd.f32 %v1206, %v1266
        %s1269 = sld [smem:[#allocation5 + $0x60]]
        %v1270 = vstv %s1269
        %v1271 = vmul.f32 %v1249, %v1270
        %v1272 = vmul.f32 %v1250, %v1270
        %v1273 = vadd.f32 %v1219, %v1271
        %v1274 = vadd.f32 %v1220, %v1272
        %s1275 = sld [smem:[#allocation5 + $0x7b]]
        %v1276 = vstv %s1275
        %v1277 = vmul.f32 %v1249, %v1276
        %v1278 = vmul.f32 %v1250, %v1276
        %v1279 = vadd.f32 %v1233, %v1277
        %v1280 = vadd.f32 %v1234, %v1278
        %s1281 = sld [smem:[#allocation5 + $0x96]]
        %v1282 = vstv %s1281
        %v1283 = vmul.f32 %v1249, %v1282
        %v1284 = vmul.f32 %v1250, %v1282
        %v1285 = vadd.f32 %v1247, %v1283
        %v1286 = vadd.f32 %v1248, %v1284
        %s1287 = sld [smem:[#allocation5 + $0x10]]
        %v1288 = vstv %s1287
        %v1289 = vmul.f32 %v1249, %v1288
        %v1290 = vmul.f32 %v1250, %v1288
        %1293 = vrot.lane.b32.xlu0 %v1289, 127
        %v1294 = vpop.permute.xlu0 %1293
        %1295 = vrot.lane.b32.xlu0 %v1290, 127
        %v1296 = vpop.permute.xlu0 %1295
        %v1299 = vadd.f32 %v1255, %v1294
        %v1300 = vadd.f32 %v1256, %v1296
        %s1301 = sld [smem:[#allocation5 + $0x2b]]
        %v1302 = vstv %s1301
        %v1303 = vmul.f32 %v1249, %v1302
        %v1304 = vmul.f32 %v1250, %v1302
        %1307 = vrot.lane.b32.xlu0 %v1303, 127
        %v1308 = vpop.permute.xlu0 %1307
        %1309 = vrot.lane.b32.xlu0 %v1304, 127
        %v1310 = vpop.permute.xlu0 %1309
        %v1313 = vadd.f32 %v1261, %v1308
        %v1314 = vadd.f32 %v1262, %v1310
        %s1315 = sld [smem:[#allocation5 + $0x46]]
        %v1316 = vstv %s1315
        %v1317 = vmul.f32 %v1249, %v1316
        %v1318 = vmul.f32 %v1250, %v1316
        %1321 = vrot.lane.b32.xlu0 %v1317, 127
        %v1322 = vpop.permute.xlu0 %1321
        %1323 = vrot.lane.b32.xlu0 %v1318, 127
        %v1324 = vpop.permute.xlu0 %1323
        %v1327 = vadd.f32 %v1267, %v1322
        %v1328 = vadd.f32 %v1268, %v1324
        %s1329 = sld [smem:[#allocation5 + $0x61]]
        %v1330 = vstv %s1329
        %v1331 = vmul.f32 %v1249, %v1330
        %v1332 = vmul.f32 %v1250, %v1330
        %1335 = vrot.lane.b32.xlu0 %v1331, 127
        %v1336 = vpop.permute.xlu0 %1335
        %1337 = vrot.lane.b32.xlu0 %v1332, 127
        %v1338 = vpop.permute.xlu0 %1337
        %v1341 = vadd.f32 %v1273, %v1336
        %v1342 = vadd.f32 %v1274, %v1338
        %s1343 = sld [smem:[#allocation5 + $0x7c]]
        %v1344 = vstv %s1343
        %v1345 = vmul.f32 %v1249, %v1344
        %v1346 = vmul.f32 %v1250, %v1344
        %1349 = vrot.lane.b32.xlu0 %v1345, 127
        %v1350 = vpop.permute.xlu0 %1349
        %1351 = vrot.lane.b32.xlu0 %v1346, 127
        %v1352 = vpop.permute.xlu0 %1351
        %v1355 = vadd.f32 %v1279, %v1350
        %v1356 = vadd.f32 %v1280, %v1352
        %s1357 = sld [smem:[#allocation5 + $0x97]]
        %v1358 = vstv %s1357
        %v1359 = vmul.f32 %v1249, %v1358
        %v1360 = vmul.f32 %v1250, %v1358
        %1363 = vrot.lane.b32.xlu0 %v1359, 127
        %v1364 = vpop.permute.xlu0 %1363
        %1365 = vrot.lane.b32.xlu0 %v1360, 127
        %v1366 = vpop.permute.xlu0 %1365
        %v1369 = vadd.f32 %v1285, %v1364
        %v1370 = vadd.f32 %v1286, %v1366
        %s1371 = sld [smem:[#allocation5 + $0x11]]
        %v1372 = vstv %s1371
        %v1373 = vmul.f32 %v1249, %v1372
        %v1374 = vmul.f32 %v1250, %v1372
        %1377 = vrot.lane.b32.xlu0 %v1373, 126
        %v1378 = vpop.permute.xlu0 %1377
        %1379 = vrot.lane.b32.xlu0 %v1374, 126
        %v1380 = vpop.permute.xlu0 %1379
        %v1383 = vadd.f32 %v1299, %v1378
        %v1384 = vadd.f32 %v1300, %v1380
        %s1385 = sld [smem:[#allocation5 + $0x2c]]
        %v1386 = vstv %s1385
        %v1387 = vmul.f32 %v1249, %v1386
        %v1388 = vmul.f32 %v1250, %v1386
        %1391 = vrot.lane.b32.xlu0 %v1387, 126
        %v1392 = vpop.permute.xlu0 %1391
        %1393 = vrot.lane.b32.xlu0 %v1388, 126
        %v1394 = vpop.permute.xlu0 %1393
        %v1397 = vadd.f32 %v1313, %v1392
        %v1398 = vadd.f32 %v1314, %v1394
        %s1399 = sld [smem:[#allocation5 + $0x47]]
        %v1400 = vstv %s1399
        %v1401 = vmul.f32 %v1249, %v1400
        %v1402 = vmul.f32 %v1250, %v1400
        %1405 = vrot.lane.b32.xlu0 %v1401, 126
        %v1406 = vpop.permute.xlu0 %1405
        %1407 = vrot.lane.b32.xlu0 %v1402, 126
        %v1408 = vpop.permute.xlu0 %1407
        %v1411 = vadd.f32 %v1327, %v1406
        %v1412 = vadd.f32 %v1328, %v1408
        %s1413 = sld [smem:[#allocation5 + $0x62]]
        %v1414 = vstv %s1413
        %v1415 = vmul.f32 %v1249, %v1414
        %v1416 = vmul.f32 %v1250, %v1414
        %1419 = vrot.lane.b32.xlu0 %v1415, 126
        %v1420 = vpop.permute.xlu0 %1419
        %1421 = vrot.lane.b32.xlu0 %v1416, 126
        %v1422 = vpop.permute.xlu0 %1421
        %v1425 = vadd.f32 %v1341, %v1420
        %v1426 = vadd.f32 %v1342, %v1422
        %s1427 = sld [smem:[#allocation5 + $0x7d]]
        %v1428 = vstv %s1427
        %v1429 = vmul.f32 %v1249, %v1428
        %v1430 = vmul.f32 %v1250, %v1428
        %1433 = vrot.lane.b32.xlu0 %v1429, 126
        %v1434 = vpop.permute.xlu0 %1433
        %1435 = vrot.lane.b32.xlu0 %v1430, 126
        %v1436 = vpop.permute.xlu0 %1435
        %v1439 = vadd.f32 %v1355, %v1434
        %v1440 = vadd.f32 %v1356, %v1436
        %s1441 = sld [smem:[#allocation5 + $0x98]]
        %v1442 = vstv %s1441
        %v1443 = vmul.f32 %v1249, %v1442
        %v1444 = vmul.f32 %v1250, %v1442
        %1447 = vrot.lane.b32.xlu0 %v1443, 126
        %v1448 = vpop.permute.xlu0 %1447
        %1449 = vrot.lane.b32.xlu0 %v1444, 126
        %v1450 = vpop.permute.xlu0 %1449
        %v1453 = vadd.f32 %v1369, %v1448
        %v1454 = vadd.f32 %v1370, %v1450
        %s1455 = scalar_lea.vmem %s181, 32 [#allocation2]
        %v1456 = vld [vmem:[%s1455] sm:$0xff]
        %v1457 = vld [vmem:[%s1455 + $0x8] sm:$0x3f]
        %s1458 = sld [smem:[#allocation5 + $0x12]]
        %v1459 = vstv %s1458
        %v1460 = vmul.f32 %v1456, %v1459
        %v1461 = vmul.f32 %v1457, %v1459
        %v1462 = vadd.f32 %v1383, %v1460
        %v1463 = vadd.f32 %v1384, %v1461
        %s1464 = sld [smem:[#allocation5 + $0x2d]]
        %v1465 = vstv %s1464
        %v1466 = vmul.f32 %v1456, %v1465
        %v1467 = vmul.f32 %v1457, %v1465
        %v1468 = vadd.f32 %v1397, %v1466
        %v1469 = vadd.f32 %v1398, %v1467
        %s1470 = sld [smem:[#allocation5 + $0x48]]
        %v1471 = vstv %s1470
        %v1472 = vmul.f32 %v1456, %v1471
        %v1473 = vmul.f32 %v1457, %v1471
        %v1474 = vadd.f32 %v1411, %v1472
        %v1475 = vadd.f32 %v1412, %v1473
        %s1476 = sld [smem:[#allocation5 + $0x63]]
        %v1477 = vstv %s1476
        %v1478 = vmul.f32 %v1456, %v1477
        %v1479 = vmul.f32 %v1457, %v1477
        %v1480 = vadd.f32 %v1425, %v1478
        %v1481 = vadd.f32 %v1426, %v1479
        %s1482 = sld [smem:[#allocation5 + $0x7e]]
        %v1483 = vstv %s1482
        %v1484 = vmul.f32 %v1456, %v1483
        %v1485 = vmul.f32 %v1457, %v1483
        %v1486 = vadd.f32 %v1439, %v1484
        %v1487 = vadd.f32 %v1440, %v1485
        %s1488 = sld [smem:[#allocation5 + $0x99]]
        %v1489 = vstv %s1488
        %v1490 = vmul.f32 %v1456, %v1489
        %v1491 = vmul.f32 %v1457, %v1489
        %v1492 = vadd.f32 %v1453, %v1490
        %v1493 = vadd.f32 %v1454, %v1491
        %s1494 = sld [smem:[#allocation5 + $0x13]]
        %v1495 = vstv %s1494
        %v1496 = vmul.f32 %v1456, %v1495
        %v1497 = vmul.f32 %v1457, %v1495
        %1500 = vrot.lane.b32.xlu0 %v1496, 127
        %v1501 = vpop.permute.xlu0 %1500
        %1502 = vrot.lane.b32.xlu0 %v1497, 127
        %v1503 = vpop.permute.xlu0 %1502
        %v1506 = vadd.f32 %v1462, %v1501
        %v1507 = vadd.f32 %v1463, %v1503
        %s1508 = sld [smem:[#allocation5 + $0x2e]]
        %v1509 = vstv %s1508
        %v1510 = vmul.f32 %v1456, %v1509
        %v1511 = vmul.f32 %v1457, %v1509
        %1514 = vrot.lane.b32.xlu0 %v1510, 127
        %v1515 = vpop.permute.xlu0 %1514
        %1516 = vrot.lane.b32.xlu0 %v1511, 127
        %v1517 = vpop.permute.xlu0 %1516
        %v1520 = vadd.f32 %v1468, %v1515
        %v1521 = vadd.f32 %v1469, %v1517
        %s1522 = sld [smem:[#allocation5 + $0x49]]
        %v1523 = vstv %s1522
        %v1524 = vmul.f32 %v1456, %v1523
        %v1525 = vmul.f32 %v1457, %v1523
        %1528 = vrot.lane.b32.xlu0 %v1524, 127
        %v1529 = vpop.permute.xlu0 %1528
        %1530 = vrot.lane.b32.xlu0 %v1525, 127
        %v1531 = vpop.permute.xlu0 %1530
        %v1534 = vadd.f32 %v1474, %v1529
        %v1535 = vadd.f32 %v1475, %v1531
        %s1536 = sld [smem:[#allocation5 + $0x64]]
        %v1537 = vstv %s1536
        %v1538 = vmul.f32 %v1456, %v1537
        %v1539 = vmul.f32 %v1457, %v1537
        %1542 = vrot.lane.b32.xlu0 %v1538, 127
        %v1543 = vpop.permute.xlu0 %1542
        %1544 = vrot.lane.b32.xlu0 %v1539, 127
        %v1545 = vpop.permute.xlu0 %1544
        %v1548 = vadd.f32 %v1480, %v1543
        %v1549 = vadd.f32 %v1481, %v1545
        %s1550 = sld [smem:[#allocation5 + $0x7f]]
        %v1551 = vstv %s1550
        %v1552 = vmul.f32 %v1456, %v1551
        %v1553 = vmul.f32 %v1457, %v1551
        %1556 = vrot.lane.b32.xlu0 %v1552, 127
        %v1557 = vpop.permute.xlu0 %1556
        %1558 = vrot.lane.b32.xlu0 %v1553, 127
        %v1559 = vpop.permute.xlu0 %1558
        %v1562 = vadd.f32 %v1486, %v1557
        %v1563 = vadd.f32 %v1487, %v1559
        %s1564 = sld [smem:[#allocation5 + $0x9a]]
        %v1565 = vstv %s1564
        %v1566 = vmul.f32 %v1456, %v1565
        %v1567 = vmul.f32 %v1457, %v1565
        %1570 = vrot.lane.b32.xlu0 %v1566, 127
        %v1571 = vpop.permute.xlu0 %1570
        %1572 = vrot.lane.b32.xlu0 %v1567, 127
        %v1573 = vpop.permute.xlu0 %1572
        %v1576 = vadd.f32 %v1492, %v1571
        %v1577 = vadd.f32 %v1493, %v1573
        %s1578 = sld [smem:[#allocation5 + $0x14]]
        %v1579 = vstv %s1578
        %v1580 = vmul.f32 %v1456, %v1579
        %v1581 = vmul.f32 %v1457, %v1579
        %1584 = vrot.lane.b32.xlu0 %v1580, 126
        %v1585 = vpop.permute.xlu0 %1584
        %1586 = vrot.lane.b32.xlu0 %v1581, 126
        %v1587 = vpop.permute.xlu0 %1586
        %v1590 = vadd.f32 %v1506, %v1585
        %v1591 = vadd.f32 %v1507, %v1587
        %s1592 = sld [smem:[#allocation5 + $0x2f]]
        %v1593 = vstv %s1592
        %v1594 = vmul.f32 %v1456, %v1593
        %v1595 = vmul.f32 %v1457, %v1593
        %1598 = vrot.lane.b32.xlu0 %v1594, 126
        %v1599 = vpop.permute.xlu0 %1598
        %1600 = vrot.lane.b32.xlu0 %v1595, 126
        %v1601 = vpop.permute.xlu0 %1600
        %v1604 = vadd.f32 %v1520, %v1599
        %v1605 = vadd.f32 %v1521, %v1601
        %s1606 = sld [smem:[#allocation5 + $0x4a]]
        %v1607 = vstv %s1606
        %v1608 = vmul.f32 %v1456, %v1607
        %v1609 = vmul.f32 %v1457, %v1607
        %1612 = vrot.lane.b32.xlu0 %v1608, 126
        %v1613 = vpop.permute.xlu0 %1612
        %1614 = vrot.lane.b32.xlu0 %v1609, 126
        %v1615 = vpop.permute.xlu0 %1614
        %v1618 = vadd.f32 %v1534, %v1613
        %v1619 = vadd.f32 %v1535, %v1615
        %s1620 = sld [smem:[#allocation5 + $0x65]]
        %v1621 = vstv %s1620
        %v1622 = vmul.f32 %v1456, %v1621
        %v1623 = vmul.f32 %v1457, %v1621
        %1626 = vrot.lane.b32.xlu0 %v1622, 126
        %v1627 = vpop.permute.xlu0 %1626
        %1628 = vrot.lane.b32.xlu0 %v1623, 126
        %v1629 = vpop.permute.xlu0 %1628
        %v1632 = vadd.f32 %v1548, %v1627
        %v1633 = vadd.f32 %v1549, %v1629
        %s1634 = sld [smem:[#allocation5 + $0x80]]
        %v1635 = vstv %s1634
        %v1636 = vmul.f32 %v1456, %v1635
        %v1637 = vmul.f32 %v1457, %v1635
        %1640 = vrot.lane.b32.xlu0 %v1636, 126
        %v1641 = vpop.permute.xlu0 %1640
        %1642 = vrot.lane.b32.xlu0 %v1637, 126
        %v1643 = vpop.permute.xlu0 %1642
        %v1646 = vadd.f32 %v1562, %v1641
        %v1647 = vadd.f32 %v1563, %v1643
        %s1648 = sld [smem:[#allocation5 + $0x9b]]
        %v1649 = vstv %s1648
        %v1650 = vmul.f32 %v1456, %v1649
        %v1651 = vmul.f32 %v1457, %v1649
        %1654 = vrot.lane.b32.xlu0 %v1650, 126
        %v1655 = vpop.permute.xlu0 %1654
        %1656 = vrot.lane.b32.xlu0 %v1651, 126
        %v1657 = vpop.permute.xlu0 %1656
        %v1660 = vadd.f32 %v1576, %v1655
        %v1661 = vadd.f32 %v1577, %v1657
        %v1662 = vld [vmem:[%s1455 + $0x1] sm:$0xff]
        %v1663 = vld [vmem:[%s1455 + $0x9] sm:$0x3f]
        %s1664 = sld [smem:[#allocation5 + $0x15]]
        %v1665 = vstv %s1664
        %v1666 = vmul.f32 %v1662, %v1665
        %v1667 = vmul.f32 %v1663, %v1665
        %v1668 = vadd.f32 %v1590, %v1666
        %v1669 = vadd.f32 %v1591, %v1667
        %s1670 = sld [smem:[#allocation5 + $0x30]]
        %v1671 = vstv %s1670
        %v1672 = vmul.f32 %v1662, %v1671
        %v1673 = vmul.f32 %v1663, %v1671
        %v1674 = vadd.f32 %v1604, %v1672
        %v1675 = vadd.f32 %v1605, %v1673
        %s1676 = sld [smem:[#allocation5 + $0x4b]]
        %v1677 = vstv %s1676
        %v1678 = vmul.f32 %v1662, %v1677
        %v1679 = vmul.f32 %v1663, %v1677
        %v1680 = vadd.f32 %v1618, %v1678
        %v1681 = vadd.f32 %v1619, %v1679
        %s1682 = sld [smem:[#allocation5 + $0x66]]
        %v1683 = vstv %s1682
        %v1684 = vmul.f32 %v1662, %v1683
        %v1685 = vmul.f32 %v1663, %v1683
        %v1686 = vadd.f32 %v1632, %v1684
        %v1687 = vadd.f32 %v1633, %v1685
        %s1688 = sld [smem:[#allocation5 + $0x81]]
        %v1689 = vstv %s1688
        %v1690 = vmul.f32 %v1662, %v1689
        %v1691 = vmul.f32 %v1663, %v1689
        %v1692 = vadd.f32 %v1646, %v1690
        %v1693 = vadd.f32 %v1647, %v1691
        %s1694 = sld [smem:[#allocation5 + $0x9c]]
        %v1695 = vstv %s1694
        %v1696 = vmul.f32 %v1662, %v1695
        %v1697 = vmul.f32 %v1663, %v1695
        %v1698 = vadd.f32 %v1660, %v1696
        %v1699 = vadd.f32 %v1661, %v1697
        %s1700 = sld [smem:[#allocation5 + $0x16]]
        %v1701 = vstv %s1700
        %v1702 = vmul.f32 %v1662, %v1701
        %v1703 = vmul.f32 %v1663, %v1701
        %1706 = vrot.lane.b32.xlu0 %v1702, 127
        %v1707 = vpop.permute.xlu0 %1706
        %1708 = vrot.lane.b32.xlu0 %v1703, 127
        %v1709 = vpop.permute.xlu0 %1708
        %v1712 = vadd.f32 %v1668, %v1707
        %v1713 = vadd.f32 %v1669, %v1709
        %s1714 = sld [smem:[#allocation5 + $0x31]]
        %v1715 = vstv %s1714
        %v1716 = vmul.f32 %v1662, %v1715
        %v1717 = vmul.f32 %v1663, %v1715
        %1720 = vrot.lane.b32.xlu0 %v1716, 127
        %v1721 = vpop.permute.xlu0 %1720
        %1722 = vrot.lane.b32.xlu0 %v1717, 127
        %v1723 = vpop.permute.xlu0 %1722
        %v1726 = vadd.f32 %v1674, %v1721
        %v1727 = vadd.f32 %v1675, %v1723
        %s1728 = sld [smem:[#allocation5 + $0x4c]]
        %v1729 = vstv %s1728
        %v1730 = vmul.f32 %v1662, %v1729
        %v1731 = vmul.f32 %v1663, %v1729
        %1734 = vrot.lane.b32.xlu0 %v1730, 127
        %v1735 = vpop.permute.xlu0 %1734
        %1736 = vrot.lane.b32.xlu0 %v1731, 127
        %v1737 = vpop.permute.xlu0 %1736
        %v1740 = vadd.f32 %v1680, %v1735
        %v1741 = vadd.f32 %v1681, %v1737
        %s1742 = sld [smem:[#allocation5 + $0x67]]
        %v1743 = vstv %s1742
        %v1744 = vmul.f32 %v1662, %v1743
        %v1745 = vmul.f32 %v1663, %v1743
        %1748 = vrot.lane.b32.xlu0 %v1744, 127
        %v1749 = vpop.permute.xlu0 %1748
        %1750 = vrot.lane.b32.xlu0 %v1745, 127
        %v1751 = vpop.permute.xlu0 %1750
        %v1754 = vadd.f32 %v1686, %v1749
        %v1755 = vadd.f32 %v1687, %v1751
        %s1756 = sld [smem:[#allocation5 + $0x82]]
        %v1757 = vstv %s1756
        %v1758 = vmul.f32 %v1662, %v1757
        %v1759 = vmul.f32 %v1663, %v1757
        %1762 = vrot.lane.b32.xlu0 %v1758, 127
        %v1763 = vpop.permute.xlu0 %1762
        %1764 = vrot.lane.b32.xlu0 %v1759, 127
        %v1765 = vpop.permute.xlu0 %1764
        %v1768 = vadd.f32 %v1692, %v1763
        %v1769 = vadd.f32 %v1693, %v1765
        %s1770 = sld [smem:[#allocation5 + $0x9d]]
        %v1771 = vstv %s1770
        %v1772 = vmul.f32 %v1662, %v1771
        %v1773 = vmul.f32 %v1663, %v1771
        %1776 = vrot.lane.b32.xlu0 %v1772, 127
        %v1777 = vpop.permute.xlu0 %1776
        %1778 = vrot.lane.b32.xlu0 %v1773, 127
        %v1779 = vpop.permute.xlu0 %1778
        %v1782 = vadd.f32 %v1698, %v1777
        %v1783 = vadd.f32 %v1699, %v1779
        %s1784 = sld [smem:[#allocation5 + $0x17]]
        %v1785 = vstv %s1784
        %v1786 = vmul.f32 %v1662, %v1785
        %v1787 = vmul.f32 %v1663, %v1785
        %1790 = vrot.lane.b32.xlu0 %v1786, 126
        %v1791 = vpop.permute.xlu0 %1790
        %1792 = vrot.lane.b32.xlu0 %v1787, 126
        %v1793 = vpop.permute.xlu0 %1792
        %v1796 = vadd.f32 %v1712, %v1791
        %v1797 = vadd.f32 %v1713, %v1793
        %s1798 = sld [smem:[#allocation5 + $0x32]]
        %v1799 = vstv %s1798
        %v1800 = vmul.f32 %v1662, %v1799
        %v1801 = vmul.f32 %v1663, %v1799
        %1804 = vrot.lane.b32.xlu0 %v1800, 126
        %v1805 = vpop.permute.xlu0 %1804
        %1806 = vrot.lane.b32.xlu0 %v1801, 126
        %v1807 = vpop.permute.xlu0 %1806
        %v1810 = vadd.f32 %v1726, %v1805
        %v1811 = vadd.f32 %v1727, %v1807
        %s1812 = sld [smem:[#allocation5 + $0x4d]]
        %v1813 = vstv %s1812
        %v1814 = vmul.f32 %v1662, %v1813
        %v1815 = vmul.f32 %v1663, %v1813
        %1818 = vrot.lane.b32.xlu0 %v1814, 126
        %v1819 = vpop.permute.xlu0 %1818
        %1820 = vrot.lane.b32.xlu0 %v1815, 126
        %v1821 = vpop.permute.xlu0 %1820
        %v1824 = vadd.f32 %v1740, %v1819
        %v1825 = vadd.f32 %v1741, %v1821
        %s1826 = sld [smem:[#allocation5 + $0x68]]
        %v1827 = vstv %s1826
        %v1828 = vmul.f32 %v1662, %v1827
        %v1829 = vmul.f32 %v1663, %v1827
        %1832 = vrot.lane.b32.xlu0 %v1828, 126
        %v1833 = vpop.permute.xlu0 %1832
        %1834 = vrot.lane.b32.xlu0 %v1829, 126
        %v1835 = vpop.permute.xlu0 %1834
        %v1838 = vadd.f32 %v1754, %v1833
        %v1839 = vadd.f32 %v1755, %v1835
        %s1840 = sld [smem:[#allocation5 + $0x83]]
        %v1841 = vstv %s1840
        %v1842 = vmul.f32 %v1662, %v1841
        %v1843 = vmul.f32 %v1663, %v1841
        %1846 = vrot.lane.b32.xlu0 %v1842, 126
        %v1847 = vpop.permute.xlu0 %1846
        %1848 = vrot.lane.b32.xlu0 %v1843, 126
        %v1849 = vpop.permute.xlu0 %1848
        %v1852 = vadd.f32 %v1768, %v1847
        %v1853 = vadd.f32 %v1769, %v1849
        %s1854 = sld [smem:[#allocation5 + $0x9e]]
        %v1855 = vstv %s1854
        %v1856 = vmul.f32 %v1662, %v1855
        %v1857 = vmul.f32 %v1663, %v1855
        %1860 = vrot.lane.b32.xlu0 %v1856, 126
        %v1861 = vpop.permute.xlu0 %1860
        %1862 = vrot.lane.b32.xlu0 %v1857, 126
        %v1863 = vpop.permute.xlu0 %1862
        %v1866 = vadd.f32 %v1782, %v1861
        %v1867 = vadd.f32 %v1783, %v1863
        %v1868 = vld [vmem:[%s1455 + $0x2] sm:$0xff]
        %v1869 = vld [vmem:[%s1455 + $0xa] sm:$0x3f]
        %s1870 = sld [smem:[#allocation5 + $0x18]]
        %v1871 = vstv %s1870
        %v1872 = vmul.f32 %v1868, %v1871
        %v1873 = vmul.f32 %v1869, %v1871
        %v1874 = vadd.f32 %v1796, %v1872
        %v1875 = vadd.f32 %v1797, %v1873
        %s1876 = sld [smem:[#allocation5 + $0x33]]
        %v1877 = vstv %s1876
        %v1878 = vmul.f32 %v1868, %v1877
        %v1879 = vmul.f32 %v1869, %v1877
        %v1880 = vadd.f32 %v1810, %v1878
        %v1881 = vadd.f32 %v1811, %v1879
        %s1882 = sld [smem:[#allocation5 + $0x4e]]
        %v1883 = vstv %s1882
        %v1884 = vmul.f32 %v1868, %v1883
        %v1885 = vmul.f32 %v1869, %v1883
        %v1886 = vadd.f32 %v1824, %v1884
        %v1887 = vadd.f32 %v1825, %v1885
        %s1888 = sld [smem:[#allocation5 + $0x69]]
        %v1889 = vstv %s1888
        %v1890 = vmul.f32 %v1868, %v1889
        %v1891 = vmul.f32 %v1869, %v1889
        %v1892 = vadd.f32 %v1838, %v1890
        %v1893 = vadd.f32 %v1839, %v1891
        %s1894 = sld [smem:[#allocation5 + $0x84]]
        %v1895 = vstv %s1894
        %v1896 = vmul.f32 %v1868, %v1895
        %v1897 = vmul.f32 %v1869, %v1895
        %v1898 = vadd.f32 %v1852, %v1896
        %v1899 = vadd.f32 %v1853, %v1897
        %s1900 = sld [smem:[#allocation5 + $0x9f]]
        %v1901 = vstv %s1900
        %v1902 = vmul.f32 %v1868, %v1901
        %v1903 = vmul.f32 %v1869, %v1901
        %v1904 = vadd.f32 %v1866, %v1902
        %v1905 = vadd.f32 %v1867, %v1903
        %s1906 = sld [smem:[#allocation5 + $0x19]]
        %v1907 = vstv %s1906
        %v1908 = vmul.f32 %v1868, %v1907
        %v1909 = vmul.f32 %v1869, %v1907
        %1912 = vrot.lane.b32.xlu0 %v1908, 127
        %v1913 = vpop.permute.xlu0 %1912
        %1914 = vrot.lane.b32.xlu0 %v1909, 127
        %v1915 = vpop.permute.xlu0 %1914
        %v1918 = vadd.f32 %v1874, %v1913
        %v1919 = vadd.f32 %v1875, %v1915
        %s1920 = sld [smem:[#allocation5 + $0x34]]
        %v1921 = vstv %s1920
        %v1922 = vmul.f32 %v1868, %v1921
        %v1923 = vmul.f32 %v1869, %v1921
        %1926 = vrot.lane.b32.xlu0 %v1922, 127
        %v1927 = vpop.permute.xlu0 %1926
        %1928 = vrot.lane.b32.xlu0 %v1923, 127
        %v1929 = vpop.permute.xlu0 %1928
        %v1932 = vadd.f32 %v1880, %v1927
        %v1933 = vadd.f32 %v1881, %v1929
        %s1934 = sld [smem:[#allocation5 + $0x4f]]
        %v1935 = vstv %s1934
        %v1936 = vmul.f32 %v1868, %v1935
        %v1937 = vmul.f32 %v1869, %v1935
        %1940 = vrot.lane.b32.xlu0 %v1936, 127
        %v1941 = vpop.permute.xlu0 %1940
        %1942 = vrot.lane.b32.xlu0 %v1937, 127
        %v1943 = vpop.permute.xlu0 %1942
        %v1946 = vadd.f32 %v1886, %v1941
        %v1947 = vadd.f32 %v1887, %v1943
        %s1948 = sld [smem:[#allocation5 + $0x6a]]
        %v1949 = vstv %s1948
        %v1950 = vmul.f32 %v1868, %v1949
        %v1951 = vmul.f32 %v1869, %v1949
        %1954 = vrot.lane.b32.xlu0 %v1950, 127
        %v1955 = vpop.permute.xlu0 %1954
        %1956 = vrot.lane.b32.xlu0 %v1951, 127
        %v1957 = vpop.permute.xlu0 %1956
        %v1960 = vadd.f32 %v1892, %v1955
        %v1961 = vadd.f32 %v1893, %v1957
        %s1962 = sld [smem:[#allocation5 + $0x85]]
        %v1963 = vstv %s1962
        %v1964 = vmul.f32 %v1868, %v1963
        %v1965 = vmul.f32 %v1869, %v1963
        %1968 = vrot.lane.b32.xlu0 %v1964, 127
        %v1969 = vpop.permute.xlu0 %1968
        %1970 = vrot.lane.b32.xlu0 %v1965, 127
        %v1971 = vpop.permute.xlu0 %1970
        %v1974 = vadd.f32 %v1898, %v1969
        %v1975 = vadd.f32 %v1899, %v1971
        %s1976 = sld [smem:[#allocation5 + $0xa0]]
        %v1977 = vstv %s1976
        %v1978 = vmul.f32 %v1868, %v1977
        %v1979 = vmul.f32 %v1869, %v1977
        %1982 = vrot.lane.b32.xlu0 %v1978, 127
        %v1983 = vpop.permute.xlu0 %1982
        %1984 = vrot.lane.b32.xlu0 %v1979, 127
        %v1985 = vpop.permute.xlu0 %1984
        %v1988 = vadd.f32 %v1904, %v1983
        %v1989 = vadd.f32 %v1905, %v1985
        %s1990 = sld [smem:[#allocation5 + $0x1a]]
        %v1991 = vstv %s1990
        %v1992 = vmul.f32 %v1868, %v1991
        %v1993 = vmul.f32 %v1869, %v1991
        %1996 = vrot.lane.b32.xlu0 %v1992, 126
        %v1997 = vpop.permute.xlu0 %1996
        %1998 = vrot.lane.b32.xlu0 %v1993, 126
        %v1999 = vpop.permute.xlu0 %1998
        %v2002 = vadd.f32 %v1918, %v1997
        %v2003 = vadd.f32 %v1919, %v1999
        %s2004 = sld [smem:[#allocation5 + $0x35]]
        %v2005 = vstv %s2004
        %v2006 = vmul.f32 %v1868, %v2005
        %v2007 = vmul.f32 %v1869, %v2005
        %2010 = vrot.lane.b32.xlu0 %v2006, 126
        %v2011 = vpop.permute.xlu0 %2010
        %2012 = vrot.lane.b32.xlu0 %v2007, 126
        %v2013 = vpop.permute.xlu0 %2012
        %v2016 = vadd.f32 %v1932, %v2011
        %v2017 = vadd.f32 %v1933, %v2013
        %s2018 = sld [smem:[#allocation5 + $0x50]]
        %v2019 = vstv %s2018
        %v2020 = vmul.f32 %v1868, %v2019
        %v2021 = vmul.f32 %v1869, %v2019
        %2024 = vrot.lane.b32.xlu0 %v2020, 126
        %v2025 = vpop.permute.xlu0 %2024
        %2026 = vrot.lane.b32.xlu0 %v2021, 126
        %v2027 = vpop.permute.xlu0 %2026
        %v2030 = vadd.f32 %v1946, %v2025
        %v2031 = vadd.f32 %v1947, %v2027
        %s2032 = sld [smem:[#allocation5 + $0x6b]]
        %v2033 = vstv %s2032
        %v2034 = vmul.f32 %v1868, %v2033
        %v2035 = vmul.f32 %v1869, %v2033
        %2038 = vrot.lane.b32.xlu0 %v2034, 126
        %v2039 = vpop.permute.xlu0 %2038
        %2040 = vrot.lane.b32.xlu0 %v2035, 126
        %v2041 = vpop.permute.xlu0 %2040
        %v2044 = vadd.f32 %v1960, %v2039
        %v2045 = vadd.f32 %v1961, %v2041
        %s2046 = sld [smem:[#allocation5 + $0x86]]
        %v2047 = vstv %s2046
        %v2048 = vmul.f32 %v1868, %v2047
        %v2049 = vmul.f32 %v1869, %v2047
        %2052 = vrot.lane.b32.xlu0 %v2048, 126
        %v2053 = vpop.permute.xlu0 %2052
        %2054 = vrot.lane.b32.xlu0 %v2049, 126
        %v2055 = vpop.permute.xlu0 %2054
        %v2058 = vadd.f32 %v1974, %v2053
        %v2059 = vadd.f32 %v1975, %v2055
        %s2060 = sld [smem:[#allocation5 + $0xa1]]
        %v2061 = vstv %s2060
        %v2062 = vmul.f32 %v1868, %v2061
        %v2063 = vmul.f32 %v1869, %v2061
        %2066 = vrot.lane.b32.xlu0 %v2062, 126
        %v2067 = vpop.permute.xlu0 %2066
        %2068 = vrot.lane.b32.xlu0 %v2063, 126
        %v2069 = vpop.permute.xlu0 %2068
        %v2072 = vadd.f32 %v1988, %v2067
        %v2073 = vadd.f32 %v1989, %v2069
        %s2074 = sld [smem:[#allocation6]]
        %v2075 = vstv %s2074
        %v2076 = vadd.f32 %v2002, %v2075
        %v2077 = vadd.f32 %v2003, %v2075
        %vm2078 = vcmask 113664
        %2079 = vst.msk [vmem:[%s217] sm:$0xff] %vm2078, %v2076
        %vm2080 = vcmask 111616
        %2081 = vst.msk [vmem:[%s217 + $0x8] sm:$0x3f] %vm2080, %v2077
        %s2082 = sld [smem:[#allocation6 + $0x1]]
        %v2083 = vstv %s2082
        %v2084 = vadd.f32 %v2016, %v2083
        %v2085 = vadd.f32 %v2017, %v2083
        %s2086 = scalar_lea.vmem %s217, 16
        %2087 = vst.msk [vmem:[%s2086] sm:$0xff] %vm2078, %v2084
        %2088 = vst.msk [vmem:[%s2086 + $0x8] sm:$0x3f] %vm2080, %v2085
        %s2089 = sld [smem:[#allocation6 + $0x2]]
        %v2090 = vstv %s2089
        %v2091 = vadd.f32 %v2030, %v2090
        %v2092 = vadd.f32 %v2031, %v2090
        %s2093 = scalar_lea.vmem %s217, 32
        %2094 = vst.msk [vmem:[%s2093] sm:$0xff] %vm2078, %v2091
        %2095 = vst.msk [vmem:[%s2093 + $0x8] sm:$0x3f] %vm2080, %v2092
        %s2096 = sld [smem:[#allocation6 + $0x3]]
        %v2097 = vstv %s2096
        %v2098 = vadd.f32 %v2044, %v2097
        %v2099 = vadd.f32 %v2045, %v2097
        %s2100 = scalar_lea.vmem %s217, 48
        %2101 = vst.msk [vmem:[%s2100] sm:$0xff] %vm2078, %v2098
        %2102 = vst.msk [vmem:[%s2100 + $0x8] sm:$0x3f] %vm2080, %v2099
        %s2103 = sld [smem:[#allocation6 + $0x4]]
        %v2104 = vstv %s2103
        %v2105 = vadd.f32 %v2058, %v2104
        %v2106 = vadd.f32 %v2059, %v2104
        %s2107 = scalar_lea.vmem %s217, 64
        %2108 = vst.msk [vmem:[%s2107] sm:$0xff] %vm2078, %v2105
        %2109 = vst.msk [vmem:[%s2107 + $0x8] sm:$0x3f] %vm2080, %v2106
        %s2110 = sld [smem:[#allocation6 + $0x5]]
        %v2111 = vstv %s2110
        %v2112 = vadd.f32 %v2072, %v2111
        %v2113 = vadd.f32 %v2073, %v2111
        %s2114 = scalar_lea.vmem %s217, 80
        %2115 = vst.msk [vmem:[%s2114] sm:$0xff] %vm2078, %v2112
        %2116 = vst.msk [vmem:[%s2114 + $0x8] sm:$0x3f] %vm2080, %v2113
        %p2117 = scmp.lt.s32.totalorder %s19, 1
        %s2118 = scalar_select %p2117, %s19, 1
        %s2119 = smul.addr %s2118, 12
        %s2120 = smul.addr %s2119, 8
        %s2121 = scalar_lea.vmem %s3, %s2120
        // Predicated region
        $region45: #{tpu_custom_call.1} parent=31 // pred_check
          %p2122 = pneg %p105
        $region46: #{tpu_custom_call.1} parent=31 // pred_check_branch
          %2124 = sbr.rel (%p2122) target = $region48
        $region47: #{tpu_custom_call.1} parent=31 // pred_region
          _
        $region48: #{tpu_custom_call.1} parent=31 // pred_fallthru
          _
      $region32: #{tpu_custom_call.1} parent=5 // pred_fallthru
        _
      %p2125 = scmp.le.s32.totalorder 2, %s14
      // Predicated region
      $region49: #{tpu_custom_call.1} parent=5 // pred_check
        %p2126 = pneg %p2125
      $region50: #{tpu_custom_call.1} parent=5 // pred_check_branch
        %2128 = sbr.rel (%p2126) target = $region52
      $region51: #{tpu_custom_call.1} parent=5 // pred_region
        %s2129 = ssub.s32 %s14, 2
        // Predicated region
        $region53: #{tpu_custom_call.1} parent=51 // pred_check
          %p2130 = pneg %p111
        $region54: #{tpu_custom_call.1} parent=51 // pred_check_branch
          %2132 = sbr.rel (%p2130) target = $region56
        $region55: #{tpu_custom_call.1} parent=51 // pred_region
          %p2133 = scmp.lt.s32.totalorder %s20, 1
          %s2134 = scalar_select %p2133, %s20, 1
          %s2135 = smul.addr %s2134, 12
          %s2136 = smul.addr %s2135, 8
          %s2137 = scalar_lea.vmem %s3, %s2136
        $region56: #{tpu_custom_call.1} parent=51 // pred_fallthru
          _
      $region52: #{tpu_custom_call.1} parent=5 // pred_fallthru
        _
    $region6: #{tpu_custom_call.1} parent=1 // loop_footer
      %s18 = sadd.s32 1, %s14
    $region7: #{tpu_custom_call.1} parent=1 // loop_footer_branch
      %13 = sbr.rel target = $region3
    $region8: #{tpu_custom_call.1} parent=1 // loop_exit
      _
    %2138 = vsyncpa [#allocation3], 1
    %s2139 = scalar_lea.sflag [#allocation3], 1
    %2140 = vsyncpa %s2139, 1
    %2141 = vsyncpa [#allocation4], 1
    %s2142 = scalar_lea.sflag [#allocation4], 1
    %2143 = vsyncpa %s2142, 1
    %2144 = vsyncpa [#allocation7], 1

</llo_original>
